<compile_context>
chip_gen: v7x
topology: tpu7x:2x2x1
jax: 0.10.0
libtpu: 0.0.40
codegen_flags: <defaults>
</compile_context>

<pallas_src>
import jax
import jax.numpy as jnp
from jax.experimental import pallas as pl
from jax.experimental.pallas import tpu as pltpu


# ----------------------------- configuration -------------------------------
CONFIG = {
    "networks": [
        {   # HistoryEncoder
            "delta": 6,
            "frames": 8,
            "hidden_sizes": [32, 32],
            "encoder_size": 16,
            "decoder_size": 8,
        },
        {   # CommandHP
            "state": 10,
            "objective": 6,
            "hidden_sizes": [32, 32],
            "output_size": 4,
        },
    ]
}

HE_CFG = CONFIG["networks"][0]
CM_CFG = CONFIG["networks"][1]

DXU_DIM = HE_CFG["delta"] * HE_CFG["frames"]        # 48 (flattened history deltas)
HE_H1, HE_H2 = HE_CFG["hidden_sizes"]               # 32, 32
ENC_DIM = HE_CFG["encoder_size"]                    # 16
TX_DIM = CM_CFG["state"]                            # 10
OBJ_DIM = CM_CFG["objective"]                       # 6
CM_H1, CM_H2 = CM_CFG["hidden_sizes"]               # 32, 32
OUT_DIM = CM_CFG["output_size"]                     # 4

HIDDEN = 32                                         # common hidden width
TXOBJ_DIM = TX_DIM + OBJ_DIM                        # 16

# Batch-lane packing factor: G rows share one packed row, G*32 = 256 lanes.
PACK_G = 8
HID_LANES = PACK_G * HIDDEN                         # 256
OUT_LANES = PACK_G * OUT_DIM                        # 32
DXU_LANES = PACK_G * DXU_DIM                        # 384
TXOBJ_LANES = PACK_G * TXOBJ_DIM                    # 128

# Row offsets inside the packed weight slab [W_ROWS, HID_LANES].
ROW_W1 = 0                                          # block-diag hw1:      [0, 384)
ROW_W2 = ROW_W1 + DXU_LANES                         # block-diag hw2:      [384, 640)
ROW_WFZ = ROW_W2 + HID_LANES                        # block-diag hw3@cw1_z [640, 896)
ROW_WT = ROW_WFZ + HID_LANES                        # block-diag cw1_txobj [896, 1024)
ROW_WC2 = ROW_WT + TXOBJ_LANES                      # block-diag cw2:      [1024, 1280)
W_ROWS = ROW_WC2 + HID_LANES                        # 1280
B_ROWS = 8                                          # bias slab rows (5 used, 3 pad)

TM_MAX_ROWS = 4096                                  # max original rows per grid step
PACK_GRAN = PACK_G * 16                             # 128: packed sublane dim stays x16 (bf16)


# ------------------------------- Pallas kernel ------------------------------
def hpnet_kernel(dxu_ref, txobj_ref, w_ref, wout_ref, b_ref, out_ref):
    f32 = jnp.float32
    bf16 = jnp.bfloat16

    def mm(x, w):                                   # bf16 x bf16 -> f32 accumulate
        return jnp.dot(x, w, preferred_element_type=f32)

    # ---- HistoryEncoder encoder (layers 1-2), G-way lane packed ----
    h = mm(dxu_ref[...], w_ref[ROW_W1:ROW_W2, :]) + b_ref[0:1, :]
    h = jnp.maximum(h, 0.0).astype(bf16)
    h = mm(h, w_ref[ROW_W2:ROW_WFZ, :]) + b_ref[1:2, :]
    h = jnp.maximum(h, 0.0).astype(bf16)

    # ---- CommandHP layer 1 with the z-path folded in ----
    # (h @ hw3 + hb3) @ cw1_z + [tx|obj] @ cw1_txobj + cb1
    #   == h @ (hw3 @ cw1_z) + [tx|obj] @ cw1_txobj + (hb3 @ cw1_z + cb1)
    t = mm(txobj_ref[...], w_ref[ROW_WT:ROW_WC2, :])          # independent of h chain
    c = mm(h, w_ref[ROW_WFZ:ROW_WT, :]) + t + b_ref[2:3, :]
    c = jnp.maximum(c, 0.0).astype(bf16)

    # ---- CommandHP layers 2-3 ----
    c = mm(c, w_ref[ROW_WC2:W_ROWS, :]) + b_ref[3:4, :]
    c = jnp.maximum(c, 0.0).astype(bf16)
    y = mm(c, wout_ref[...]) + b_ref[4:5, :OUT_LANES]          # (rows, G*4) dense store

    out_ref[...] = y.astype(out_ref.dtype)


# ------------------------------ parameter init ------------------------------
def init_params(key):
    """Deterministic synthetic parameters (PyTorch-nn.Linear-shaped, pre-transposed)."""
    def linear(key, fan_in, fan_out):
        kw, kb = jax.random.split(key)
        bound = 1.0 / jnp.sqrt(jnp.float32(fan_in))
        w = jax.random.uniform(kw, (fan_in, fan_out), jnp.float32, -bound, bound)
        b = jax.random.uniform(kb, (1, fan_out), jnp.float32, -bound, bound)
        return w, b

    keys = jax.random.split(key, 6)
    hw1, hb1 = linear(keys[0], DXU_DIM, HE_H1)
    hw2, hb2 = linear(keys[1], HE_H1, HE_H2)
    hw3, hb3 = linear(keys[2], HE_H2, ENC_DIM)

    # CommandHP first layer takes concat([tx, obj, z]); build full weight then split.
    cw1_full, cb1 = linear(keys[3], TX_DIM + OBJ_DIM + ENC_DIM, CM_H1)
    cw1_tx = cw1_full[:TX_DIM]
    cw1_obj = cw1_full[TX_DIM:TX_DIM + OBJ_DIM]
    cw1_z = cw1_full[TX_DIM + OBJ_DIM:]
    cw2, cb2 = linear(keys[4], CM_H1, CM_H2)
    cw3, cb3 = linear(keys[5], CM_H2, OUT_DIM)

    return dict(
        hw1=hw1, hb1=hb1, hw2=hw2, hb2=hb2, hw3=hw3, hb3=hb3,
        cw1_tx=cw1_tx, cw1_obj=cw1_obj, cw1_z=cw1_z, cb1=cb1,
        cw2=cw2, cb2=cb2, cw3=cw3, cb3=cb3,
    )


def pack_params(p, g=PACK_G):
    """Fold z-path, stack tx/obj weights, build G-way block-diagonal bf16 slabs."""
    assert HE_H1 == HE_H2 == CM_H1 == CM_H2 == HIDDEN
    f32, bf16 = jnp.float32, jnp.bfloat16
    eye = jnp.eye(g, dtype=f32)
    bd = lambda w: jnp.kron(eye, w)                 # (K,N) -> block-diag (g*K, g*N)
    tile = lambda b: jnp.tile(b, (1, g))            # (1,N) -> (1, g*N)

    w_fz = p["hw3"] @ p["cw1_z"]                                   # (32, 32)
    b_fz = p["hb3"] @ p["cw1_z"] + p["cb1"]                        # (1, 32)
    w_txobj = jnp.concatenate([p["cw1_tx"], p["cw1_obj"]], axis=0)  # (16, 32)

    w_slab = jnp.concatenate(
        [bd(p["hw1"]), bd(p["hw2"]), bd(w_fz), bd(w_txobj), bd(p["cw2"])],
        axis=0).astype(bf16)                                        # (1280, 256)
    w_out = bd(p["cw3"]).astype(bf16)                               # (256, 32)

    b_out = jnp.zeros((1, HID_LANES), f32).at[:, :OUT_LANES].set(tile(p["cb3"]))
    b_slab = jnp.concatenate(
        [tile(p["hb1"]), tile(p["hb2"]), tile(b_fz), tile(p["cb2"]), b_out,
         jnp.zeros((B_ROWS - 5, HID_LANES), f32)], axis=0)          # (8, 256) f32

    assert w_slab.shape == (W_ROWS, HID_LANES)
    assert w_out.shape == (HID_LANES, OUT_LANES)
    assert b_slab.shape == (B_ROWS, HID_LANES)
    return w_slab, w_out, b_slab


# --------------------------------- wrapper -----------------------------------
def _round_up(x, m):
    return (x + m - 1) // m * m


def _cdiv(a, b):
    return (a + b - 1) // b


@jax.jit
def hpnet_forward(tx_com, obj_com, dxu_par, w_slab, w_out, b_slab):
    """Returns (y_com, None), matching HPNet.forward."""
    batch = tx_com.shape[0]
    txobj = jnp.concatenate([tx_com, obj_com], axis=1).astype(jnp.bfloat16)
    dxu = dxu_par.astype(jnp.bfloat16)

    # --- batch tiling: big row tiles, even grid length >= 2 for v7x megacore ---
    b_min = _round_up(batch, PACK_GRAN)
    n_tiles = _cdiv(b_min, TM_MAX_ROWS)
    if b_min > PACK_GRAN:                       # tiny batches: keep a single tile
        n_tiles = max(2, n_tiles)
        n_tiles += n_tiles % 2                  # even -> balanced across v7x's 2 TCs
    tm = _round_up(_cdiv(b_min, n_tiles), PACK_GRAN)
    b_pad = tm * n_tiles

    if b_pad != batch:
        pad = ((0, b_pad - batch), (0, 0))
        txobj = jnp.pad(txobj, pad)
        dxu = jnp.pad(dxu, pad)

    # --- lane-pack PACK_G consecutive rows (row-major reshape == free bitcast) ---
    rows = b_pad // PACK_G
    dxu_p = dxu.reshape(rows, DXU_LANES)
    txobj_p = txobj.reshape(rows, TXOBJ_LANES)
    tmp = tm // PACK_G                           # packed rows per grid step

    y_p = pl.pallas_call(
        hpnet_kernel,
        out_shape=jax.ShapeDtypeStruct((rows, OUT_LANES), jnp.float32),
        grid_spec=pltpu.PrefetchScalarGridSpec(
            num_scalar_prefetch=0,
            grid=(n_tiles,),
            in_specs=[
                pl.BlockSpec((tmp, DXU_LANES), lambda i: (i, 0)),
                pl.BlockSpec((tmp, TXOBJ_LANES), lambda i: (i, 0)),
                # Weights / biases stay resident across the batch grid (constant
                # index maps).  pipeline_mode=pl.Buffered(1) would shave a little
                # VMEM here; omitted to keep the call maximally portable.
                pl.BlockSpec((W_ROWS, HID_LANES), lambda i: (0, 0)),
                pl.BlockSpec((HID_LANES, OUT_LANES), lambda i: (0, 0)),
                pl.BlockSpec((B_ROWS, HID_LANES), lambda i: (0, 0)),
            ],
            out_specs=pl.BlockSpec((tmp, OUT_LANES), lambda i: (i, 0)),
        ),
        compiler_params=pltpu.CompilerParams(
            dimension_semantics=("parallel",)),   # shards batch tiles across v7x's 2 TCs
    )(dxu_p, txobj_p, w_slab, w_out, b_slab)

    y = y_p.reshape(b_pad, OUT_DIM)[:batch]
    return y, None


# -------------------------------- references ---------------------------------
def hpnet_reference(tx_com, obj_com, dxu_par, p):
    """Pure-f32 JAX reference (unfused, unpacked), mirrors the PyTorch module."""
    h = jnp.maximum(dxu_par @ p["hw1"] + p["hb1"], 0.0)
    h = jnp.maximum(h @ p["hw2"] + p["hb2"], 0.0)
    z = h @ p["hw3"] + p["hb3"]
    c = jnp.maximum(
        tx_com @ p["cw1_tx"] + obj_com @ p["cw1_obj"] + z @ p["cw1_z"] + p["cb1"], 0.0)
    c = jnp.maximum(c @ p["cw2"] + p["cb2"], 0.0)
    return c @ p["cw3"] + p["cb3"]


def hpnet_reference_bf16(tx_com, obj_com, dxu_par, p):
    """Reference mirroring the kernel's rounding: bf16 operands, f32 accumulation,
    folded z-path.  Should match the Pallas kernel almost exactly."""
    bf16, f32 = jnp.bfloat16, jnp.float32
    mm = lambda x, w: jnp.dot(x.astype(bf16), w.astype(bf16), preferred_element_type=f32)
    w_fz = p["hw3"] @ p["cw1_z"]
    b_fz = p["hb3"] @ p["cw1_z"] + p["cb1"]
    w_txobj = jnp.concatenate([p["cw1_tx"], p["cw1_obj"]], axis=0)
    txobj = jnp.concatenate([tx_com, obj_com], axis=1)
    h = jnp.maximum(mm(dxu_par, p["hw1"]) + p["hb1"], 0.0)
    h = jnp.maximum(mm(h, p["hw2"]) + p["hb2"], 0.0)
    c = jnp.maximum(mm(h, w_fz) + mm(txobj, w_txobj) + b_fz, 0.0)
    c = jnp.maximum(mm(c, p["cw2"]) + p["cb2"], 0.0)
    return mm(c, p["cw3"]) + p["cb3"]


# ----------------------------------- main ------------------------------------
if __name__ == "__main__":
    key = jax.random.PRNGKey(0)
    k_params, k_tx, k_obj, k_dxu, k_tx2, k_obj2, k_dxu2 = jax.random.split(key, 7)

    params = init_params(k_params)
    w_slab, w_out, b_slab = pack_params(params)

    # --- small-batch case (latency path: single grid step) ---
    batch = 2
    tx_com = jax.random.normal(k_tx, (batch, TX_DIM), jnp.float32)
    obj_com = jax.random.normal(k_obj, (batch, OBJ_DIM), jnp.float32)
    dxu_par = jax.random.normal(k_dxu, (batch, DXU_DIM), jnp.float32)

    y_com, z_none = hpnet_forward(tx_com, obj_com, dxu_par, w_slab, w_out, b_slab)
    y_com = jax.block_until_ready(y_com)
    assert y_com.shape == (batch, OUT_DIM)
    assert z_none is None

    y_bf = hpnet_reference_bf16(tx_com, obj_com, dxu_par, params)
    y_f32 = hpnet_reference(tx_com, obj_com, dxu_par, params)
    assert jnp.allclose(y_com, y_bf, atol=5e-3, rtol=5e-3), \
        "Pallas kernel mismatch vs bf16-matched reference (small batch)"
    assert jnp.allclose(y_com, y_f32, atol=1e-1, rtol=1e-1), \
        "Pallas kernel mismatch vs f32 reference (small batch)"

    # --- large-batch case (exercises padding, lane packing, 2-tile parallel grid) ---
    big = 1037
    tx_b = jax.random.normal(k_tx2, (big, TX_DIM), jnp.float32)
    obj_b = jax.random.normal(k_obj2, (big, OBJ_DIM), jnp.float32)
    dxu_b = jax.random.normal(k_dxu2, (big, DXU_DIM), jnp.float32)

    y_big, _ = hpnet_forward(tx_b, obj_b, dxu_b, w_slab, w_out, b_slab)
    y_big = jax.block_until_ready(y_big)
    assert y_big.shape == (big, OUT_DIM)

    y_big_bf = hpnet_reference_bf16(tx_b, obj_b, dxu_b, params)
    y_big_f32 = hpnet_reference(tx_b, obj_b, dxu_b, params)
    assert jnp.allclose(y_big, y_big_bf, atol=5e-3, rtol=5e-3), \
        "Pallas kernel mismatch vs bf16-matched reference (large batch)"
    assert jnp.allclose(y_big, y_big_f32, atol=1e-1, rtol=1e-1), \
        "Pallas kernel mismatch vs f32 reference (large batch)"

    print("KERNEL_OK")
</pallas_src>

<mosaic_0001>
module attributes {stable_mosaic.version = 11 : i64} {
  func.func @hpnet_kernel(%arg0: i32, %arg1: memref<16x384xbf16, #tpu.memory_space<vmem>>, %arg2: memref<16x128xbf16, #tpu.memory_space<vmem>>, %arg3: memref<1280x256xbf16, #tpu.memory_space<vmem>>, %arg4: memref<256x32xbf16, #tpu.memory_space<vmem>>, %arg5: memref<8x256xf32, #tpu.memory_space<vmem>>, %arg6: memref<16x32xf32, #tpu.memory_space<vmem>>) attributes {dimension_semantics = [#tpu.dimension_semantics<parallel>], iteration_bounds = array<i64: 1>, scalar_prefetch = 0 : i64, scratch_operands = 0 : i64, tpu.core_type = #tpu.core_type<tc>, window_params = [{transform_indices = @transform_0, window_bounds = array<i64: 16, 384>}, {transform_indices = @transform_1, window_bounds = array<i64: 16, 128>}, {pipeline_mode = #tpu.pipeline_mode<synchronous>, transform_indices = @transform_2, window_bounds = array<i64: 1280, 256>}, {pipeline_mode = #tpu.pipeline_mode<synchronous>, transform_indices = @transform_3, window_bounds = array<i64: 256, 32>}, {pipeline_mode = #tpu.pipeline_mode<synchronous>, transform_indices = @transform_4, window_bounds = array<i64: 8, 256>}, {transform_indices = @transform_5, window_bounds = array<i64: 16, 32>}]} {
    %c0 = arith.constant 0 : index
    %c0_0 = arith.constant 0 : index
    %0 = vector.load %arg1[%c0, %c0_0] : memref<16x384xbf16, #tpu.memory_space<vmem>>, vector<16x384xbf16>
    %c0_1 = arith.constant 0 : index
    %c0_2 = arith.constant 0 : index
    %1 = vector.load %arg3[%c0_1, %c0_2] : memref<1280x256xbf16, #tpu.memory_space<vmem>>, vector<384x256xbf16>
    %cst = arith.constant dense<0.000000e+00> : vector<16x256xf32>
    %2 = tpu.matmul %0, %1, %cst {dimension_numbers = #tpu.dot_dimension_numbers<[1], [0], [0], [1], [0, 0, 1, 1], [], []>} : vector<16x384xbf16>, vector<384x256xbf16>, vector<16x256xf32> -> vector<16x256xf32>
    %c0_3 = arith.constant 0 : index
    %c0_4 = arith.constant 0 : index
    %3 = vector.load %arg5[%c0_3, %c0_4] : memref<8x256xf32, #tpu.memory_space<vmem>>, vector<1x256xf32>
    %4 = vector.broadcast %3 : vector<1x256xf32> to vector<16x256xf32>
    %5 = arith.addf %2, %4 : vector<16x256xf32>
    %cst_5 = arith.constant 0.000000e+00 : f32
    %6 = vector.broadcast %cst_5 : f32 to vector<16x256xf32>
    %7 = arith.maximumf %5, %6 : vector<16x256xf32>
    %8 = arith.truncf %7 : vector<16x256xf32> to vector<16x256xbf16>
    %c384 = arith.constant 384 : index
    %c0_6 = arith.constant 0 : index
    %9 = vector.load %arg3[%c384, %c0_6] : memref<1280x256xbf16, #tpu.memory_space<vmem>>, vector<256x256xbf16>
    %cst_7 = arith.constant dense<0.000000e+00> : vector<16x256xf32>
    %10 = tpu.matmul %8, %9, %cst_7 {dimension_numbers = #tpu.dot_dimension_numbers<[1], [0], [0], [1], [0, 0, 1, 1], [], []>} : vector<16x256xbf16>, vector<256x256xbf16>, vector<16x256xf32> -> vector<16x256xf32>
    %c1 = arith.constant 1 : index
    %c0_8 = arith.constant 0 : index
    %11 = vector.load %arg5[%c1, %c0_8] : memref<8x256xf32, #tpu.memory_space<vmem>>, vector<1x256xf32>
    %12 = vector.broadcast %11 : vector<1x256xf32> to vector<16x256xf32>
    %13 = arith.addf %10, %12 : vector<16x256xf32>
    %cst_9 = arith.constant 0.000000e+00 : f32
    %14 = vector.broadcast %cst_9 : f32 to vector<16x256xf32>
    %15 = arith.maximumf %13, %14 : vector<16x256xf32>
    %16 = arith.truncf %15 : vector<16x256xf32> to vector<16x256xbf16>
    %c0_10 = arith.constant 0 : index
    %c0_11 = arith.constant 0 : index
    %17 = vector.load %arg2[%c0_10, %c0_11] : memref<16x128xbf16, #tpu.memory_space<vmem>>, vector<16x128xbf16>
    %c896 = arith.constant 896 : index
    %c0_12 = arith.constant 0 : index
    %18 = vector.load %arg3[%c896, %c0_12] : memref<1280x256xbf16, #tpu.memory_space<vmem>>, vector<128x256xbf16>
    %cst_13 = arith.constant dense<0.000000e+00> : vector<16x256xf32>
    %19 = tpu.matmul %17, %18, %cst_13 {dimension_numbers = #tpu.dot_dimension_numbers<[1], [0], [0], [1], [0, 0, 1, 1], [], []>} : vector<16x128xbf16>, vector<128x256xbf16>, vector<16x256xf32> -> vector<16x256xf32>
    %c640 = arith.constant 640 : index
    %c0_14 = arith.constant 0 : index
    %20 = vector.load %arg3[%c640, %c0_14] : memref<1280x256xbf16, #tpu.memory_space<vmem>>, vector<256x256xbf16>
    %cst_15 = arith.constant dense<0.000000e+00> : vector<16x256xf32>
    %21 = tpu.matmul %16, %20, %cst_15 {dimension_numbers = #tpu.dot_dimension_numbers<[1], [0], [0], [1], [0, 0, 1, 1], [], []>} : vector<16x256xbf16>, vector<256x256xbf16>, vector<16x256xf32> -> vector<16x256xf32>
    %22 = arith.addf %21, %19 : vector<16x256xf32>
    %c2 = arith.constant 2 : index
    %c0_16 = arith.constant 0 : index
    %23 = vector.load %arg5[%c2, %c0_16] : memref<8x256xf32, #tpu.memory_space<vmem>>, vector<1x256xf32>
    %24 = vector.broadcast %23 : vector<1x256xf32> to vector<16x256xf32>
    %25 = arith.addf %22, %24 : vector<16x256xf32>
    %cst_17 = arith.constant 0.000000e+00 : f32
    %26 = vector.broadcast %cst_17 : f32 to vector<16x256xf32>
    %27 = arith.maximumf %25, %26 : vector<16x256xf32>
    %28 = arith.truncf %27 : vector<16x256xf32> to vector<16x256xbf16>
    %c1024 = arith.constant 1024 : index
    %c0_18 = arith.constant 0 : index
    %29 = vector.load %arg3[%c1024, %c0_18] : memref<1280x256xbf16, #tpu.memory_space<vmem>>, vector<256x256xbf16>
    %cst_19 = arith.constant dense<0.000000e+00> : vector<16x256xf32>
    %30 = tpu.matmul %28, %29, %cst_19 {dimension_numbers = #tpu.dot_dimension_numbers<[1], [0], [0], [1], [0, 0, 1, 1], [], []>} : vector<16x256xbf16>, vector<256x256xbf16>, vector<16x256xf32> -> vector<16x256xf32>
    %c3 = arith.constant 3 : index
    %c0_20 = arith.constant 0 : index
    %31 = vector.load %arg5[%c3, %c0_20] : memref<8x256xf32, #tpu.memory_space<vmem>>, vector<1x256xf32>
    %32 = vector.broadcast %31 : vector<1x256xf32> to vector<16x256xf32>
    %33 = arith.addf %30, %32 : vector<16x256xf32>
    %cst_21 = arith.constant 0.000000e+00 : f32
    %34 = vector.broadcast %cst_21 : f32 to vector<16x256xf32>
    %35 = arith.maximumf %33, %34 : vector<16x256xf32>
    %36 = arith.truncf %35 : vector<16x256xf32> to vector<16x256xbf16>
    %c0_22 = arith.constant 0 : index
    %c0_23 = arith.constant 0 : index
    %37 = vector.load %arg4[%c0_22, %c0_23] : memref<256x32xbf16, #tpu.memory_space<vmem>>, vector<256x32xbf16>
    %cst_24 = arith.constant dense<0.000000e+00> : vector<16x32xf32>
    %38 = tpu.matmul %36, %37, %cst_24 {dimension_numbers = #tpu.dot_dimension_numbers<[1], [0], [0], [1], [0, 0, 1, 1], [], []>} : vector<16x256xbf16>, vector<256x32xbf16>, vector<16x32xf32> -> vector<16x32xf32>
    %c4 = arith.constant 4 : index
    %c0_25 = arith.constant 0 : index
    %39 = vector.load %arg5[%c4, %c0_25] : memref<8x256xf32, #tpu.memory_space<vmem>>, vector<1x32xf32>
    %40 = vector.broadcast %39 : vector<1x32xf32> to vector<16x32xf32>
    %41 = arith.addf %38, %40 : vector<16x32xf32>
    %c0_26 = arith.constant 0 : index
    %c0_27 = arith.constant 0 : index
    %42 = vector.load %arg6[%c0_26, %c0_27] : memref<16x32xf32, #tpu.memory_space<vmem>>, vector<16x32xf32>
    tpu.vector_store %arg6[%c0_26, %c0_27], %41 {strides = array<i32>} : memref<16x32xf32, #tpu.memory_space<vmem>>, vector<16x32xf32>,
    return
  }
  func.func @transform_0(%arg0: i32) -> (i32, i32) {
    %c0_i32 = arith.constant 0 : i32
    %c0_i32_0 = arith.constant 0 : i32
    return %arg0, %c0_i32 : i32, i32
  }
  func.func @transform_1(%arg0: i32) -> (i32, i32) {
    %c0_i32 = arith.constant 0 : i32
    %c0_i32_0 = arith.constant 0 : i32
    return %arg0, %c0_i32 : i32, i32
  }
  func.func @transform_2(%arg0: i32) -> (i32, i32) {
    %c0_i32 = arith.constant 0 : i32
    %c0_i32_0 = arith.constant 0 : i32
    %c0_i32_1 = arith.constant 0 : i32
    return %c0_i32, %c0_i32_0 : i32, i32
  }
  func.func @transform_3(%arg0: i32) -> (i32, i32) {
    %c0_i32 = arith.constant 0 : i32
    %c0_i32_0 = arith.constant 0 : i32
    %c0_i32_1 = arith.constant 0 : i32
    return %c0_i32, %c0_i32_0 : i32, i32
  }
  func.func @transform_4(%arg0: i32) -> (i32, i32) {
    %c0_i32 = arith.constant 0 : i32
    %c0_i32_0 = arith.constant 0 : i32
    %c0_i32_1 = arith.constant 0 : i32
    return %c0_i32, %c0_i32_0 : i32, i32
  }
  func.func @transform_5(%arg0: i32) -> (i32, i32) {
    %c0_i32 = arith.constant 0 : i32
    %c0_i32_0 = arith.constant 0 : i32
    return %arg0, %c0_i32 : i32, i32
  }
}

</mosaic_0001>

<llo_original>
// kernel: hpnet_forward.1
$region0: #{hpnet_forward.1}
  #allocation0 [shape = 'u32[]', space=smem, size = 0x4, offset = 0x4, fixed_abs, tag = 'smem constant byte address 0x4 - core index']
  #allocation1 [shape = 'u32[144,128]{1,0:T(1,128)}', space=vmem, size = 0x12000, scoped, tag = 'internal scratch']
  %s0 = inlined_call_operand.vmem [shape: bf16[16,384], index: 0, kind: input, shape index: {}]
  %s1 = inlined_call_operand.vmem [shape: bf16[16,128], index: 1, kind: input, shape index: {}]
  %s2 = inlined_call_operand.hbm [shape: bf16[1280,256], index: 2, kind: input, shape index: {}]
  %s3 = inlined_call_operand.vmem [shape: bf16[256,32], index: 3, kind: input, shape index: {}]
  %s4 = inlined_call_operand.vmem [shape: f32[8,256], index: 4, kind: input, shape index: {}]
  %s5 = inlined_call_operand.vmem [shape: f32[16,32], index: 5, kind: output, shape index: {}]
  %s6 = sld [smem:[#allocation0]]
  $region34: #{hpnet_forward.1} parent=0
    _
  %s8 = ssub.s32 1, %s6
  %s9 = scalar_select 0, %s8, %s6
  $region1: #{hpnet_forward.1} parent=0
    #allocation2 [shape = 'u8[655360]{0}', space=vmem, size = 0xa0000, scoped, tag = 'input window, operand 2, single buffered']
    #allocation3 [shape = 's32[1]{0}', space=sflag, size = 0x4, scoped, tag = 'scoped memory for hpnet_forward.1']
    %10 = vsyncpa [#allocation3], 0
    // Predicated region
    $region2: #{hpnet_forward.1} parent=1 // pred_check
      _
    $region3: #{hpnet_forward.1} parent=1 // pred_check_branch
      %12 = sbr.rel (0) target = $region5
    $region4: #{hpnet_forward.1} parent=1 // pred_region
      _
    $region5: #{hpnet_forward.1} parent=1 // pred_fallthru
      _
    // Predicated region
    $region6: #{hpnet_forward.1} parent=1 // pred_check
      _
    $region7: #{hpnet_forward.1} parent=1 // pred_check_branch
      %14 = sbr.rel (0) target = $region9
    $region8: #{hpnet_forward.1} parent=1 // pred_region
      _
    $region9: #{hpnet_forward.1} parent=1 // pred_fallthru
      _
    // Predicated region
    $region10: #{hpnet_forward.1} parent=1 // pred_check
      _
    $region11: #{hpnet_forward.1} parent=1 // pred_check_branch
      %16 = sbr.rel (0) target = $region13
    $region12: #{hpnet_forward.1} parent=1 // pred_region
      %s18 = ssub.s32 20480, 20480
      %19 = vsyncadd [#allocation3], %s18
      %s20 = sshll.u32 [#allocation2], 4
      %s21 = int_to_ptr.vmem [resolvable:$true] %s20
      %26 = dma.hbm_to_vmem [thread:$0]  %s2, 20480, %s21, [#allocation3], 128, 128, 8
    $region13: #{hpnet_forward.1} parent=1 // pred_fallthru
      _
    // Predicated region
    $region14: #{hpnet_forward.1} parent=1 // pred_check
      _
    $region15: #{hpnet_forward.1} parent=1 // pred_check_branch
      %28 = sbr.rel (0) target = $region17
    $region16: #{hpnet_forward.1} parent=1 // pred_region
      _
    $region17: #{hpnet_forward.1} parent=1 // pred_fallthru
      _
    // Predicated region
    $region18: #{hpnet_forward.1} parent=1 // pred_check
      _
    $region19: #{hpnet_forward.1} parent=1 // pred_check_branch
      %30 = sbr.rel (0) target = $region21
    $region20: #{hpnet_forward.1} parent=1 // pred_region
      _
    $region21: #{hpnet_forward.1} parent=1 // pred_fallthru
      _
    // Predicated region
    $region22: #{hpnet_forward.1} parent=1 // pred_check
      _
    $region23: #{hpnet_forward.1} parent=1 // pred_check_branch
      %32 = sbr.rel (0) target = $region25
    $region24: #{hpnet_forward.1} parent=1 // pred_region
      %33 = dma.done [#allocation3], 20480
    $region25: #{hpnet_forward.1} parent=1 // pred_fallthru
      _
    %v35 = vld [vmem:[%s0] sm:$0xff]
    %v36 = vld [vmem:[%s0 + $0x8] sm:$0xf]
    %v37 = vld [vmem:[%s0 + $0xc] sm:$0xff]
    %v38 = vld [vmem:[%s0 + $0x14] sm:$0xf]
    %v39 = vld [vmem:[#allocation2] sm:$0xff]
    %v40 = vld [vmem:[#allocation2 + $0x8] sm:$0xff]
    %v41 = vld [vmem:[#allocation2 + $0x10] sm:$0xff]
    %v42 = vld [vmem:[#allocation2 + $0x18] sm:$0xff]
    %v43 = vld [vmem:[#allocation2 + $0x20] sm:$0xff]
    %v44 = vld [vmem:[#allocation2 + $0x28] sm:$0xff]
    %v45 = vld [vmem:[#allocation2 + $0x30] sm:$0xff]
    %v46 = vld [vmem:[#allocation2 + $0x38] sm:$0xff]
    %v47 = vld [vmem:[#allocation2 + $0x40] sm:$0xff]
    %v48 = vld [vmem:[#allocation2 + $0x48] sm:$0xff]
    %v49 = vld [vmem:[#allocation2 + $0x50] sm:$0xff]
    %v50 = vld [vmem:[#allocation2 + $0x58] sm:$0xff]
    %v51 = vld [vmem:[#allocation2 + $0x60] sm:$0xff]
    %v52 = vld [vmem:[#allocation2 + $0x68] sm:$0xff]
    %v53 = vld [vmem:[#allocation2 + $0x70] sm:$0xff]
    %v54 = vld [vmem:[#allocation2 + $0x78] sm:$0xff]
    %v55 = vld [vmem:[#allocation2 + $0x80] sm:$0xff]
    %v56 = vld [vmem:[#allocation2 + $0x88] sm:$0xff]
    %v57 = vld [vmem:[#allocation2 + $0x90] sm:$0xff]
    %v58 = vld [vmem:[#allocation2 + $0x98] sm:$0xff]
    %v59 = vld [vmem:[#allocation2 + $0xa0] sm:$0xff]
    %v60 = vld [vmem:[#allocation2 + $0xa8] sm:$0xff]
    %v61 = vld [vmem:[#allocation2 + $0xb0] sm:$0xff]
    %v62 = vld [vmem:[#allocation2 + $0xb8] sm:$0xff]
    %v63 = vld [vmem:[#allocation2 + $0xc0] sm:$0xff]
    %v64 = vld [vmem:[#allocation2 + $0xc8] sm:$0xff]
    %v65 = vld [vmem:[#allocation2 + $0xd0] sm:$0xff]
    %v66 = vld [vmem:[#allocation2 + $0xd8] sm:$0xff]
    %v67 = vld [vmem:[#allocation2 + $0xe0] sm:$0xff]
    %v68 = vld [vmem:[#allocation2 + $0xe8] sm:$0xff]
    %v69 = vld [vmem:[#allocation2 + $0xf0] sm:$0xff]
    %v70 = vld [vmem:[#allocation2 + $0xf8] sm:$0xff]
    %v71 = vld [vmem:[#allocation2 + $0x100] sm:$0xff]
    %v72 = vld [vmem:[#allocation2 + $0x108] sm:$0xff]
    %v73 = vld [vmem:[#allocation2 + $0x110] sm:$0xff]
    %v74 = vld [vmem:[#allocation2 + $0x118] sm:$0xff]
    %v75 = vld [vmem:[#allocation2 + $0x120] sm:$0xff]
    %v76 = vld [vmem:[#allocation2 + $0x128] sm:$0xff]
    %v77 = vld [vmem:[#allocation2 + $0x130] sm:$0xff]
    %v78 = vld [vmem:[#allocation2 + $0x138] sm:$0xff]
    %v79 = vld [vmem:[#allocation2 + $0x140] sm:$0xff]
    %v80 = vld [vmem:[#allocation2 + $0x148] sm:$0xff]
    %v81 = vld [vmem:[#allocation2 + $0x150] sm:$0xff]
    %v82 = vld [vmem:[#allocation2 + $0x158] sm:$0xff]
    %v83 = vld [vmem:[#allocation2 + $0x160] sm:$0xff]
    %v84 = vld [vmem:[#allocation2 + $0x168] sm:$0xff]
    %v85 = vld [vmem:[#allocation2 + $0x170] sm:$0xff]
    %v86 = vld [vmem:[#allocation2 + $0x178] sm:$0xff]
    %v87 = vld [vmem:[%s4] ss:$8 sm:$0x3]
    %v89 = vlaneseq
    %v90 = vshrl.u32 %v89, 7
    %v91 = vsub.s32 0, %v90
    %v92 = vrot.slane %v87, %v91
    %v93 = vlaneseq
    %v94 = vshrl.u32 %v93, 7
    %v95 = vsub.s32 1, %v94
    %v96 = vrot.slane %v87, %v95
    %v103 = vunpack.c.l.b16 %v35
    %v104 = vunpack.c.h.b16 %v35
    %v105 = vunpack.c.l.b16 %v36
    %v106 = vunpack.c.l.b16 %v37
    %v107 = vunpack.c.h.b16 %v37
    %v108 = vunpack.c.l.b16 %v38
    %v109 = vpack.c.b16 %v106, %v103
    %v110 = vpack.c.b16 %v107, %v104
    %v111 = vpack.c.b16 %v108, %v105
    %v163 = vunpack.c.l.b16 %v39
    %v164 = vunpack.c.h.b16 %v39
    %v165 = vunpack.c.l.b16 %v40
    %v166 = vunpack.c.h.b16 %v40
    %v167 = vunpack.c.l.b16 %v41
    %v168 = vunpack.c.h.b16 %v41
    %v169 = vunpack.c.l.b16 %v42
    %v170 = vunpack.c.h.b16 %v42
    %v171 = vunpack.c.l.b16 %v43
    %v172 = vunpack.c.h.b16 %v43
    %v173 = vunpack.c.l.b16 %v44
    %v174 = vunpack.c.h.b16 %v44
    %v175 = vunpack.c.l.b16 %v45
    %v176 = vunpack.c.h.b16 %v45
    %v177 = vunpack.c.l.b16 %v46
    %v178 = vunpack.c.h.b16 %v46
    %v179 = vunpack.c.l.b16 %v47
    %v180 = vunpack.c.h.b16 %v47
    %v181 = vunpack.c.l.b16 %v48
    %v182 = vunpack.c.h.b16 %v48
    %v183 = vunpack.c.l.b16 %v49
    %v184 = vunpack.c.h.b16 %v49
    %v185 = vunpack.c.l.b16 %v50
    %v186 = vunpack.c.h.b16 %v50
    %v187 = vunpack.c.l.b16 %v51
    %v188 = vunpack.c.h.b16 %v51
    %v189 = vunpack.c.l.b16 %v52
    %v190 = vunpack.c.h.b16 %v52
    %v191 = vunpack.c.l.b16 %v53
    %v192 = vunpack.c.h.b16 %v53
    %v193 = vunpack.c.l.b16 %v54
    %v194 = vunpack.c.h.b16 %v54
    %v195 = vunpack.c.l.b16 %v55
    %v196 = vunpack.c.h.b16 %v55
    %v197 = vunpack.c.l.b16 %v56
    %v198 = vunpack.c.h.b16 %v56
    %v199 = vunpack.c.l.b16 %v57
    %v200 = vunpack.c.h.b16 %v57
    %v201 = vunpack.c.l.b16 %v58
    %v202 = vunpack.c.h.b16 %v58
    %v203 = vunpack.c.l.b16 %v59
    %v204 = vunpack.c.h.b16 %v59
    %v205 = vunpack.c.l.b16 %v60
    %v206 = vunpack.c.h.b16 %v60
    %v207 = vunpack.c.l.b16 %v61
    %v208 = vunpack.c.h.b16 %v61
    %v209 = vunpack.c.l.b16 %v62
    %v210 = vunpack.c.h.b16 %v62
    %v211 = vunpack.c.l.b16 %v63
    %v212 = vunpack.c.h.b16 %v63
    %v213 = vunpack.c.l.b16 %v64
    %v214 = vunpack.c.h.b16 %v64
    %v215 = vunpack.c.l.b16 %v65
    %v216 = vunpack.c.h.b16 %v65
    %v217 = vunpack.c.l.b16 %v66
    %v218 = vunpack.c.h.b16 %v66
    %v219 = vunpack.c.l.b16 %v67
    %v220 = vunpack.c.h.b16 %v67
    %v221 = vunpack.c.l.b16 %v68
    %v222 = vunpack.c.h.b16 %v68
    %v223 = vunpack.c.l.b16 %v69
    %v224 = vunpack.c.h.b16 %v69
    %v225 = vunpack.c.l.b16 %v70
    %v226 = vunpack.c.h.b16 %v70
    %v227 = vunpack.c.l.b16 %v71
    %v228 = vunpack.c.h.b16 %v71
    %v229 = vunpack.c.l.b16 %v72
    %v230 = vunpack.c.h.b16 %v72
    %v231 = vunpack.c.l.b16 %v73
    %v232 = vunpack.c.h.b16 %v73
    %v233 = vunpack.c.l.b16 %v74
    %v234 = vunpack.c.h.b16 %v74
    %v235 = vunpack.c.l.b16 %v75
    %v236 = vunpack.c.h.b16 %v75
    %v237 = vunpack.c.l.b16 %v76
    %v238 = vunpack.c.h.b16 %v76
    %v239 = vunpack.c.l.b16 %v77
    %v240 = vunpack.c.h.b16 %v77
    %v241 = vunpack.c.l.b16 %v78
    %v242 = vunpack.c.h.b16 %v78
    %v243 = vunpack.c.l.b16 %v79
    %v244 = vunpack.c.h.b16 %v79
    %v245 = vunpack.c.l.b16 %v80
    %v246 = vunpack.c.h.b16 %v80
    %v247 = vunpack.c.l.b16 %v81
    %v248 = vunpack.c.h.b16 %v81
    %v249 = vunpack.c.l.b16 %v82
    %v250 = vunpack.c.h.b16 %v82
    %v251 = vunpack.c.l.b16 %v83
    %v252 = vunpack.c.h.b16 %v83
    %v253 = vunpack.c.l.b16 %v84
    %v254 = vunpack.c.h.b16 %v84
    %v255 = vunpack.c.l.b16 %v85
    %v256 = vunpack.c.h.b16 %v85
    %v257 = vunpack.c.l.b16 %v86
    %v258 = vunpack.c.h.b16 %v86
    %v259 = vpack.c.b16 %v165, %v163
    %v260 = vpack.c.b16 %v166, %v164
    %v261 = vpack.c.b16 %v169, %v167
    %v262 = vpack.c.b16 %v170, %v168
    %v263 = vpack.c.b16 %v173, %v171
    %v264 = vpack.c.b16 %v174, %v172
    %v265 = vpack.c.b16 %v177, %v175
    %v266 = vpack.c.b16 %v178, %v176
    %v267 = vpack.c.b16 %v181, %v179
    %v268 = vpack.c.b16 %v182, %v180
    %v269 = vpack.c.b16 %v185, %v183
    %v270 = vpack.c.b16 %v186, %v184
    %v271 = vpack.c.b16 %v189, %v187
    %v272 = vpack.c.b16 %v190, %v188
    %v273 = vpack.c.b16 %v193, %v191
    %v274 = vpack.c.b16 %v194, %v192
    %v275 = vpack.c.b16 %v197, %v195
    %v276 = vpack.c.b16 %v198, %v196
    %v277 = vpack.c.b16 %v201, %v199
    %v278 = vpack.c.b16 %v202, %v200
    %v279 = vpack.c.b16 %v205, %v203
    %v280 = vpack.c.b16 %v206, %v204
    %v281 = vpack.c.b16 %v209, %v207
    %v282 = vpack.c.b16 %v210, %v208
    %v283 = vpack.c.b16 %v213, %v211
    %v284 = vpack.c.b16 %v214, %v212
    %v285 = vpack.c.b16 %v217, %v215
    %v286 = vpack.c.b16 %v218, %v216
    %v287 = vpack.c.b16 %v221, %v219
    %v288 = vpack.c.b16 %v222, %v220
    %v289 = vpack.c.b16 %v225, %v223
    %v290 = vpack.c.b16 %v226, %v224
    %v291 = vpack.c.b16 %v229, %v227
    %v292 = vpack.c.b16 %v230, %v228
    %v293 = vpack.c.b16 %v233, %v231
    %v294 = vpack.c.b16 %v234, %v232
    %v295 = vpack.c.b16 %v237, %v235
    %v296 = vpack.c.b16 %v238, %v236
    %v297 = vpack.c.b16 %v241, %v239
    %v298 = vpack.c.b16 %v242, %v240
    %v299 = vpack.c.b16 %v245, %v243
    %v300 = vpack.c.b16 %v246, %v244
    %v301 = vpack.c.b16 %v249, %v247
    %v302 = vpack.c.b16 %v250, %v248
    %v303 = vpack.c.b16 %v253, %v251
    %v304 = vpack.c.b16 %v254, %v252
    %v305 = vpack.c.b16 %v257, %v255
    %v306 = vpack.c.b16 %v258, %v256
    %355 = vmatprep.subr.bf16.mxu0 %v260
    %356 = vmatpush1.bf16.msra.mxu0 %v259
    %357 = vmatprep.subr.bf16.mxu0 %v262
    %358 = vmatpush1.bf16.msra.mxu0 %v261
    %359 = vmatprep.subr.bf16.mxu0 %v264
    %360 = vmatpush1.bf16.msra.mxu0 %v263
    %361 = vmatprep.subr.bf16.mxu0 %v266
    %362 = vmatpush1.bf16.msra.mxu0 %v265
    %363 = vmatprep.subr.bf16.mxu0 %v268
    %364 = vmatpush1.bf16.msra.mxu0 %v267
    %365 = vmatprep.subr.bf16.mxu0 %v270
    %366 = vmatpush1.bf16.msra.mxu0 %v269
    %367 = vmatprep.subr.bf16.mxu0 %v272
    %368 = vmatpush1.bf16.msra.mxu0 %v271
    %369 = vmatprep.subr.bf16.mxu0 %v274
    %370 = vmatpush1.bf16.msra.mxu0 %v273
    %371 = vmatprep.subr.bf16.mxu0 %v276
    %372 = vmatpush1.bf16.msra.mxu0 %v275
    %373 = vmatprep.subr.bf16.mxu0 %v278
    %374 = vmatpush1.bf16.msra.mxu0 %v277
    %375 = vmatprep.subr.bf16.mxu0 %v280
    %376 = vmatpush1.bf16.msra.mxu0 %v279
    %377 = vmatprep.subr.bf16.mxu0 %v282
    %378 = vmatpush1.bf16.msra.mxu0 %v281
    %379 = vmatprep.subr.bf16.mxu0 %v284
    %380 = vmatpush1.bf16.msra.mxu0 %v283
    %381 = vmatprep.subr.bf16.mxu0 %v286
    %382 = vmatpush1.bf16.msra.mxu0 %v285
    %383 = vmatprep.subr.bf16.mxu0 %v288
    %384 = vmatpush1.bf16.msra.mxu0 %v287
    %385 = vmatprep.subr.bf16.mxu0 %v290
    %386 = vmatpush1.bf16.msra.mxu0 %v289
    %387 = vmatprep.mubr.bf16.mxu0 %v110
    %388 = vmatmul.mubr.bf16.gmra.mrb[0].mxu0 %v109
    %v389 = vpop.f32.mrb[0].mxu0
    %v390 = vadd.f32 %v92, %v389
    %v391 = vpop.f32.mrb[0].mxu0
    %v392 = vadd.f32 %v96, %v391
    %v393 = vpop.f32.mrb[0].mxu0
    %v394 = vadd.f32 %v92, %v393
    %v395 = vpop.f32.mrb[0].mxu0
    %v396 = vadd.f32 %v96, %v395
    %397 = vdwg.mxu0
    %398 = vmatprep.subr.bf16.mxu0 %v292
    %399 = vmatpush1.bf16.msra.mxu0 %v291
    %400 = vmatprep.subr.bf16.mxu0 %v294
    %401 = vmatpush1.bf16.msra.mxu0 %v293
    %402 = vmatprep.subr.bf16.mxu0 %v296
    %403 = vmatpush1.bf16.msra.mxu0 %v295
    %404 = vmatprep.subr.bf16.mxu0 %v298
    %405 = vmatpush1.bf16.msra.mxu0 %v297
    %406 = vmatprep.subr.bf16.mxu0 %v300
    %407 = vmatpush1.bf16.msra.mxu0 %v299
    %408 = vmatprep.subr.bf16.mxu0 %v302
    %409 = vmatpush1.bf16.msra.mxu0 %v301
    %410 = vmatprep.subr.bf16.mxu0 %v304
    %411 = vmatpush1.bf16.msra.mxu0 %v303
    %412 = vmatprep.subr.bf16.mxu0 %v306
    %413 = vmatpush1.bf16.msra.mxu0 %v305
    %414 = vmatprep.subr.bf16.mxu0 0
    %415 = vmatpush1.bf16.msra.mxu0 0
    %416 = vmatprep.subr.bf16.mxu0 0
    %417 = vmatpush1.bf16.msra.mxu0 0
    %418 = vmatprep.subr.bf16.mxu0 0
    %419 = vmatpush1.bf16.msra.mxu0 0
    %420 = vmatprep.subr.bf16.mxu0 0
    %421 = vmatpush1.bf16.msra.mxu0 0
    %422 = vmatprep.subr.bf16.mxu0 0
    %423 = vmatpush1.bf16.msra.mxu0 0
    %424 = vmatprep.subr.bf16.mxu0 0
    %425 = vmatpush1.bf16.msra.mxu0 0
    %426 = vmatprep.subr.bf16.mxu0 0
    %427 = vmatpush1.bf16.msra.mxu0 0
    %428 = vmatprep.subr.bf16.mxu0 0
    %429 = vmatpush1.bf16.msra.mxu0 0
    %430 = vmatprep.mubr.bf16.mxu0 0
    %431 = vmatmul.mubr.bf16.gmra.mrb[0].mxu0 %v111
    %v432 = vpop.f32.mrb[0].mxu0
    %v433 = vadd.f32 %v390, %v432
    %v434 = vpop.f32.mrb[0].mxu0
    %v435 = vadd.f32 %v392, %v434
    %v436 = vpop.f32.mrb[0].mxu0
    %v437 = vadd.f32 %v394, %v436
    %v438 = vpop.f32.mrb[0].mxu0
    %v439 = vadd.f32 %v396, %v438
    %440 = vdwg.mxu0
    %v441 = vmax.f32 %v433, 0.0
    %v442 = vmax.f32 %v435, 0.0
    %v443 = vmax.f32 %v437, 0.0
    %v444 = vmax.f32 %v439, 0.0
    %v445 = vpack.c.bf16 %v443, %v441
    %v446 = vpack.c.bf16 %v444, %v442
    %v447 = vld [vmem:[#allocation2 + $0x180] sm:$0xff]
    %v448 = vld [vmem:[#allocation2 + $0x188] sm:$0xff]
    %v449 = vld [vmem:[#allocation2 + $0x190] sm:$0xff]
    %v450 = vld [vmem:[#allocation2 + $0x198] sm:$0xff]
    %v451 = vld [vmem:[#allocation2 + $0x1a0] sm:$0xff]
    %v452 = vld [vmem:[#allocation2 + $0x1a8] sm:$0xff]
    %v453 = vld [vmem:[#allocation2 + $0x1b0] sm:$0xff]
    %v454 = vld [vmem:[#allocation2 + $0x1b8] sm:$0xff]
    %v455 = vld [vmem:[#allocation2 + $0x1c0] sm:$0xff]
    %v456 = vld [vmem:[#allocation2 + $0x1c8] sm:$0xff]
    %v457 = vld [vmem:[#allocation2 + $0x1d0] sm:$0xff]
    %v458 = vld [vmem:[#allocation2 + $0x1d8] sm:$0xff]
    %v459 = vld [vmem:[#allocation2 + $0x1e0] sm:$0xff]
    %v460 = vld [vmem:[#allocation2 + $0x1e8] sm:$0xff]
    %v461 = vld [vmem:[#allocation2 + $0x1f0] sm:$0xff]
    %v462 = vld [vmem:[#allocation2 + $0x1f8] sm:$0xff]
    %v463 = vld [vmem:[#allocation2 + $0x200] sm:$0xff]
    %v464 = vld [vmem:[#allocation2 + $0x208] sm:$0xff]
    %v465 = vld [vmem:[#allocation2 + $0x210] sm:$0xff]
    %v466 = vld [vmem:[#allocation2 + $0x218] sm:$0xff]
    %v467 = vld [vmem:[#allocation2 + $0x220] sm:$0xff]
    %v468 = vld [vmem:[#allocation2 + $0x228] sm:$0xff]
    %v469 = vld [vmem:[#allocation2 + $0x230] sm:$0xff]
    %v470 = vld [vmem:[#allocation2 + $0x238] sm:$0xff]
    %v471 = vld [vmem:[#allocation2 + $0x240] sm:$0xff]
    %v472 = vld [vmem:[#allocation2 + $0x248] sm:$0xff]
    %v473 = vld [vmem:[#allocation2 + $0x250] sm:$0xff]
    %v474 = vld [vmem:[#allocation2 + $0x258] sm:$0xff]
    %v475 = vld [vmem:[#allocation2 + $0x260] sm:$0xff]
    %v476 = vld [vmem:[#allocation2 + $0x268] sm:$0xff]
    %v477 = vld [vmem:[#allocation2 + $0x270] sm:$0xff]
    %v478 = vld [vmem:[#allocation2 + $0x278] sm:$0xff]
    %s479 = scalar_lea.vmem %s4, 1
    %v480 = vld [vmem:[%s479] ss:$8 sm:$0x3]
    %v482 = vlaneseq
    %v483 = vshrl.u32 %v482, 7
    %v484 = vsub.s32 0, %v483
    %v485 = vrot.slane %v480, %v484
    %v486 = vlaneseq
    %v487 = vshrl.u32 %v486, 7
    %v488 = vsub.s32 1, %v487
    %v489 = vrot.slane %v480, %v488
    %v524 = vunpack.c.l.b16 %v447
    %v525 = vunpack.c.h.b16 %v447
    %v526 = vunpack.c.l.b16 %v448
    %v527 = vunpack.c.h.b16 %v448
    %v528 = vunpack.c.l.b16 %v449
    %v529 = vunpack.c.h.b16 %v449
    %v530 = vunpack.c.l.b16 %v450
    %v531 = vunpack.c.h.b16 %v450
    %v532 = vunpack.c.l.b16 %v451
    %v533 = vunpack.c.h.b16 %v451
    %v534 = vunpack.c.l.b16 %v452
    %v535 = vunpack.c.h.b16 %v452
    %v536 = vunpack.c.l.b16 %v453
    %v537 = vunpack.c.h.b16 %v453
    %v538 = vunpack.c.l.b16 %v454
    %v539 = vunpack.c.h.b16 %v454
    %v540 = vunpack.c.l.b16 %v455
    %v541 = vunpack.c.h.b16 %v455
    %v542 = vunpack.c.l.b16 %v456
    %v543 = vunpack.c.h.b16 %v456
    %v544 = vunpack.c.l.b16 %v457
    %v545 = vunpack.c.h.b16 %v457
    %v546 = vunpack.c.l.b16 %v458
    %v547 = vunpack.c.h.b16 %v458
    %v548 = vunpack.c.l.b16 %v459
    %v549 = vunpack.c.h.b16 %v459
    %v550 = vunpack.c.l.b16 %v460
    %v551 = vunpack.c.h.b16 %v460
    %v552 = vunpack.c.l.b16 %v461
    %v553 = vunpack.c.h.b16 %v461
    %v554 = vunpack.c.l.b16 %v462
    %v555 = vunpack.c.h.b16 %v462
    %v556 = vunpack.c.l.b16 %v463
    %v557 = vunpack.c.h.b16 %v463
    %v558 = vunpack.c.l.b16 %v464
    %v559 = vunpack.c.h.b16 %v464
    %v560 = vunpack.c.l.b16 %v465
    %v561 = vunpack.c.h.b16 %v465
    %v562 = vunpack.c.l.b16 %v466
    %v563 = vunpack.c.h.b16 %v466
    %v564 = vunpack.c.l.b16 %v467
    %v565 = vunpack.c.h.b16 %v467
    %v566 = vunpack.c.l.b16 %v468
    %v567 = vunpack.c.h.b16 %v468
    %v568 = vunpack.c.l.b16 %v469
    %v569 = vunpack.c.h.b16 %v469
    %v570 = vunpack.c.l.b16 %v470
    %v571 = vunpack.c.h.b16 %v470
    %v572 = vunpack.c.l.b16 %v471
    %v573 = vunpack.c.h.b16 %v471
    %v574 = vunpack.c.l.b16 %v472
    %v575 = vunpack.c.h.b16 %v472
    %v576 = vunpack.c.l.b16 %v473
    %v577 = vunpack.c.h.b16 %v473
    %v578 = vunpack.c.l.b16 %v474
    %v579 = vunpack.c.h.b16 %v474
    %v580 = vunpack.c.l.b16 %v475
    %v581 = vunpack.c.h.b16 %v475
    %v582 = vunpack.c.l.b16 %v476
    %v583 = vunpack.c.h.b16 %v476
    %v584 = vunpack.c.l.b16 %v477
    %v585 = vunpack.c.h.b16 %v477
    %v586 = vunpack.c.l.b16 %v478
    %v587 = vunpack.c.h.b16 %v478
    %v588 = vpack.c.b16 %v526, %v524
    %v589 = vpack.c.b16 %v527, %v525
    %v590 = vpack.c.b16 %v530, %v528
    %v591 = vpack.c.b16 %v531, %v529
    %v592 = vpack.c.b16 %v534, %v532
    %v593 = vpack.c.b16 %v535, %v533
    %v594 = vpack.c.b16 %v538, %v536
    %v595 = vpack.c.b16 %v539, %v537
    %v596 = vpack.c.b16 %v542, %v540
    %v597 = vpack.c.b16 %v543, %v541
    %v598 = vpack.c.b16 %v546, %v544
    %v599 = vpack.c.b16 %v547, %v545
    %v600 = vpack.c.b16 %v550, %v548
    %v601 = vpack.c.b16 %v551, %v549
    %v602 = vpack.c.b16 %v554, %v552
    %v603 = vpack.c.b16 %v555, %v553
    %v604 = vpack.c.b16 %v558, %v556
    %v605 = vpack.c.b16 %v559, %v557
    %v606 = vpack.c.b16 %v562, %v560
    %v607 = vpack.c.b16 %v563, %v561
    %v608 = vpack.c.b16 %v566, %v564
    %v609 = vpack.c.b16 %v567, %v565
    %v610 = vpack.c.b16 %v570, %v568
    %v611 = vpack.c.b16 %v571, %v569
    %v612 = vpack.c.b16 %v574, %v572
    %v613 = vpack.c.b16 %v575, %v573
    %v614 = vpack.c.b16 %v578, %v576
    %v615 = vpack.c.b16 %v579, %v577
    %v616 = vpack.c.b16 %v582, %v580
    %v617 = vpack.c.b16 %v583, %v581
    %v618 = vpack.c.b16 %v586, %v584
    %v619 = vpack.c.b16 %v587, %v585
    %652 = vmatprep.subr.bf16.mxu0 %v589
    %653 = vmatpush1.bf16.msra.mxu0 %v588
    %654 = vmatprep.subr.bf16.mxu0 %v591
    %655 = vmatpush1.bf16.msra.mxu0 %v590
    %656 = vmatprep.subr.bf16.mxu0 %v593
    %657 = vmatpush1.bf16.msra.mxu0 %v592
    %658 = vmatprep.subr.bf16.mxu0 %v595
    %659 = vmatpush1.bf16.msra.mxu0 %v594
    %660 = vmatprep.subr.bf16.mxu0 %v597
    %661 = vmatpush1.bf16.msra.mxu0 %v596
    %662 = vmatprep.subr.bf16.mxu0 %v599
    %663 = vmatpush1.bf16.msra.mxu0 %v598
    %664 = vmatprep.subr.bf16.mxu0 %v601
    %665 = vmatpush1.bf16.msra.mxu0 %v600
    %666 = vmatprep.subr.bf16.mxu0 %v603
    %667 = vmatpush1.bf16.msra.mxu0 %v602
    %668 = vmatprep.subr.bf16.mxu0 %v605
    %669 = vmatpush1.bf16.msra.mxu0 %v604
    %670 = vmatprep.subr.bf16.mxu0 %v607
    %671 = vmatpush1.bf16.msra.mxu0 %v606
    %672 = vmatprep.subr.bf16.mxu0 %v609
    %673 = vmatpush1.bf16.msra.mxu0 %v608
    %674 = vmatprep.subr.bf16.mxu0 %v611
    %675 = vmatpush1.bf16.msra.mxu0 %v610
    %676 = vmatprep.subr.bf16.mxu0 %v613
    %677 = vmatpush1.bf16.msra.mxu0 %v612
    %678 = vmatprep.subr.bf16.mxu0 %v615
    %679 = vmatpush1.bf16.msra.mxu0 %v614
    %680 = vmatprep.subr.bf16.mxu0 %v617
    %681 = vmatpush1.bf16.msra.mxu0 %v616
    %682 = vmatprep.subr.bf16.mxu0 %v619
    %683 = vmatpush1.bf16.msra.mxu0 %v618
    %684 = vmatprep.mubr.bf16.mxu0 %v446
    %685 = vmatmul.mubr.bf16.gmra.mrb[0].mxu0 %v445
    %v686 = vpop.f32.mrb[0].mxu0
    %v687 = vadd.f32 %v485, %v686
    %v688 = vpop.f32.mrb[0].mxu0
    %v689 = vadd.f32 %v489, %v688
    %v690 = vpop.f32.mrb[0].mxu0
    %v691 = vadd.f32 %v485, %v690
    %v692 = vpop.f32.mrb[0].mxu0
    %v693 = vadd.f32 %v489, %v692
    %694 = vdwg.mxu0
    %v695 = vmax.f32 %v687, 0.0
    %v696 = vmax.f32 %v689, 0.0
    %v697 = vmax.f32 %v691, 0.0
    %v698 = vmax.f32 %v693, 0.0
    %v699 = vpack.c.bf16 %v697, %v695
    %v700 = vpack.c.bf16 %v698, %v696
    %v701 = vld [vmem:[%s1] sm:$0xf]
    %v702 = vld [vmem:[%s1 + $0x4] sm:$0xf]
    %v703 = vld [vmem:[#allocation2 + $0x380] sm:$0xff]
    %v704 = vld [vmem:[#allocation2 + $0x388] sm:$0xff]
    %v705 = vld [vmem:[#allocation2 + $0x390] sm:$0xff]
    %v706 = vld [vmem:[#allocation2 + $0x398] sm:$0xff]
    %v707 = vld [vmem:[#allocation2 + $0x3a0] sm:$0xff]
    %v708 = vld [vmem:[#allocation2 + $0x3a8] sm:$0xff]
    %v709 = vld [vmem:[#allocation2 + $0x3b0] sm:$0xff]
    %v710 = vld [vmem:[#allocation2 + $0x3b8] sm:$0xff]
    %v711 = vld [vmem:[#allocation2 + $0x3c0] sm:$0xff]
    %v712 = vld [vmem:[#allocation2 + $0x3c8] sm:$0xff]
    %v713 = vld [vmem:[#allocation2 + $0x3d0] sm:$0xff]
    %v714 = vld [vmem:[#allocation2 + $0x3d8] sm:$0xff]
    %v715 = vld [vmem:[#allocation2 + $0x3e0] sm:$0xff]
    %v716 = vld [vmem:[#allocation2 + $0x3e8] sm:$0xff]
    %v717 = vld [vmem:[#allocation2 + $0x3f0] sm:$0xff]
    %v718 = vld [vmem:[#allocation2 + $0x3f8] sm:$0xff]
    %v721 = vunpack.c.l.b16 %v701
    %v722 = vunpack.c.l.b16 %v702
    %v723 = vpack.c.b16 %v722, %v721
    %v741 = vunpack.c.l.b16 %v703
    %v742 = vunpack.c.h.b16 %v703
    %v743 = vunpack.c.l.b16 %v704
    %v744 = vunpack.c.h.b16 %v704
    %v745 = vunpack.c.l.b16 %v705
    %v746 = vunpack.c.h.b16 %v705
    %v747 = vunpack.c.l.b16 %v706
    %v748 = vunpack.c.h.b16 %v706
    %v749 = vunpack.c.l.b16 %v707
    %v750 = vunpack.c.h.b16 %v707
    %v751 = vunpack.c.l.b16 %v708
    %v752 = vunpack.c.h.b16 %v708
    %v753 = vunpack.c.l.b16 %v709
    %v754 = vunpack.c.h.b16 %v709
    %v755 = vunpack.c.l.b16 %v710
    %v756 = vunpack.c.h.b16 %v710
    %v757 = vunpack.c.l.b16 %v711
    %v758 = vunpack.c.h.b16 %v711
    %v759 = vunpack.c.l.b16 %v712
    %v760 = vunpack.c.h.b16 %v712
    %v761 = vunpack.c.l.b16 %v713
    %v762 = vunpack.c.h.b16 %v713
    %v763 = vunpack.c.l.b16 %v714
    %v764 = vunpack.c.h.b16 %v714
    %v765 = vunpack.c.l.b16 %v715
    %v766 = vunpack.c.h.b16 %v715
    %v767 = vunpack.c.l.b16 %v716
    %v768 = vunpack.c.h.b16 %v716
    %v769 = vunpack.c.l.b16 %v717
    %v770 = vunpack.c.h.b16 %v717
    %v771 = vunpack.c.l.b16 %v718
    %v772 = vunpack.c.h.b16 %v718
    %v773 = vpack.c.b16 %v743, %v741
    %v774 = vpack.c.b16 %v744, %v742
    %v775 = vpack.c.b16 %v747, %v745
    %v776 = vpack.c.b16 %v748, %v746
    %v777 = vpack.c.b16 %v751, %v749
    %v778 = vpack.c.b16 %v752, %v750
    %v779 = vpack.c.b16 %v755, %v753
    %v780 = vpack.c.b16 %v756, %v754
    %v781 = vpack.c.b16 %v759, %v757
    %v782 = vpack.c.b16 %v760, %v758
    %v783 = vpack.c.b16 %v763, %v761
    %v784 = vpack.c.b16 %v764, %v762
    %v785 = vpack.c.b16 %v767, %v765
    %v786 = vpack.c.b16 %v768, %v766
    %v787 = vpack.c.b16 %v771, %v769
    %v788 = vpack.c.b16 %v772, %v770
    %805 = vmatprep.subr.bf16.mxu0 %v774
    %806 = vmatpush1.bf16.msra.mxu0 %v773
    %807 = vmatprep.subr.bf16.mxu0 %v776
    %808 = vmatpush1.bf16.msra.mxu0 %v775
    %809 = vmatprep.subr.bf16.mxu0 %v778
    %810 = vmatpush1.bf16.msra.mxu0 %v777
    %811 = vmatprep.subr.bf16.mxu0 %v780
    %812 = vmatpush1.bf16.msra.mxu0 %v779
    %813 = vmatprep.subr.bf16.mxu0 %v782
    %814 = vmatpush1.bf16.msra.mxu0 %v781
    %815 = vmatprep.subr.bf16.mxu0 %v784
    %816 = vmatpush1.bf16.msra.mxu0 %v783
    %817 = vmatprep.subr.bf16.mxu0 %v786
    %818 = vmatpush1.bf16.msra.mxu0 %v785
    %819 = vmatprep.subr.bf16.mxu0 %v788
    %820 = vmatpush1.bf16.msra.mxu0 %v787
    %821 = vmatprep.subr.bf16.mxu0 0
    %822 = vmatpush1.bf16.msra.mxu0 0
    %823 = vmatprep.subr.bf16.mxu0 0
    %824 = vmatpush1.bf16.msra.mxu0 0
    %825 = vmatprep.subr.bf16.mxu0 0
    %826 = vmatpush1.bf16.msra.mxu0 0
    %827 = vmatprep.subr.bf16.mxu0 0
    %828 = vmatpush1.bf16.msra.mxu0 0
    %829 = vmatprep.subr.bf16.mxu0 0
    %830 = vmatpush1.bf16.msra.mxu0 0
    %831 = vmatprep.subr.bf16.mxu0 0
    %832 = vmatpush1.bf16.msra.mxu0 0
    %833 = vmatprep.subr.bf16.mxu0 0
    %834 = vmatpush1.bf16.msra.mxu0 0
    %835 = vmatprep.subr.bf16.mxu0 0
    %836 = vmatpush1.bf16.msra.mxu0 0
    %837 = vmatprep.mubr.bf16.mxu0 0
    %838 = vmatmul.mubr.bf16.gmra.mrb[0].mxu0 %v723
    %v839 = vpop.f32.mrb[0].mxu0
    %v840 = vadd.f32 0.0, %v839
    %v841 = vpop.f32.mrb[0].mxu0
    %v842 = vadd.f32 0.0, %v841
    %v843 = vpop.f32.mrb[0].mxu0
    %v844 = vadd.f32 0.0, %v843
    %v845 = vpop.f32.mrb[0].mxu0
    %v846 = vadd.f32 0.0, %v845
    %847 = vdwg.mxu0
    %v848 = vld [vmem:[#allocation2 + $0x280] sm:$0xff]
    %v849 = vld [vmem:[#allocation2 + $0x288] sm:$0xff]
    %v850 = vld [vmem:[#allocation2 + $0x290] sm:$0xff]
    %v851 = vld [vmem:[#allocation2 + $0x298] sm:$0xff]
    %v852 = vld [vmem:[#allocation2 + $0x2a0] sm:$0xff]
    %v853 = vld [vmem:[#allocation2 + $0x2a8] sm:$0xff]
    %v854 = vld [vmem:[#allocation2 + $0x2b0] sm:$0xff]
    %v855 = vld [vmem:[#allocation2 + $0x2b8] sm:$0xff]
    %v856 = vld [vmem:[#allocation2 + $0x2c0] sm:$0xff]
    %v857 = vld [vmem:[#allocation2 + $0x2c8] sm:$0xff]
    %v858 = vld [vmem:[#allocation2 + $0x2d0] sm:$0xff]
    %v859 = vld [vmem:[#allocation2 + $0x2d8] sm:$0xff]
    %v860 = vld [vmem:[#allocation2 + $0x2e0] sm:$0xff]
    %v861 = vld [vmem:[#allocation2 + $0x2e8] sm:$0xff]
    %v862 = vld [vmem:[#allocation2 + $0x2f0] sm:$0xff]
    %v863 = vld [vmem:[#allocation2 + $0x2f8] sm:$0xff]
    %v864 = vld [vmem:[#allocation2 + $0x300] sm:$0xff]
    %v865 = vld [vmem:[#allocation2 + $0x308] sm:$0xff]
    %v866 = vld [vmem:[#allocation2 + $0x310] sm:$0xff]
    %v867 = vld [vmem:[#allocation2 + $0x318] sm:$0xff]
    %v868 = vld [vmem:[#allocation2 + $0x320] sm:$0xff]
    %v869 = vld [vmem:[#allocation2 + $0x328] sm:$0xff]
    %v870 = vld [vmem:[#allocation2 + $0x330] sm:$0xff]
    %v871 = vld [vmem:[#allocation2 + $0x338] sm:$0xff]
    %v872 = vld [vmem:[#allocation2 + $0x340] sm:$0xff]
    %v873 = vld [vmem:[#allocation2 + $0x348] sm:$0xff]
    %v874 = vld [vmem:[#allocation2 + $0x350] sm:$0xff]
    %v875 = vld [vmem:[#allocation2 + $0x358] sm:$0xff]
    %v876 = vld [vmem:[#allocation2 + $0x360] sm:$0xff]
    %v877 = vld [vmem:[#allocation2 + $0x368] sm:$0xff]
    %v878 = vld [vmem:[#allocation2 + $0x370] sm:$0xff]
    %v879 = vld [vmem:[#allocation2 + $0x378] sm:$0xff]
    %v912 = vunpack.c.l.b16 %v848
    %v913 = vunpack.c.h.b16 %v848
    %v914 = vunpack.c.l.b16 %v849
    %v915 = vunpack.c.h.b16 %v849
    %v916 = vunpack.c.l.b16 %v850
    %v917 = vunpack.c.h.b16 %v850
    %v918 = vunpack.c.l.b16 %v851
    %v919 = vunpack.c.h.b16 %v851
    %v920 = vunpack.c.l.b16 %v852
    %v921 = vunpack.c.h.b16 %v852
    %v922 = vunpack.c.l.b16 %v853
    %v923 = vunpack.c.h.b16 %v853
    %v924 = vunpack.c.l.b16 %v854
    %v925 = vunpack.c.h.b16 %v854
    %v926 = vunpack.c.l.b16 %v855
    %v927 = vunpack.c.h.b16 %v855
    %v928 = vunpack.c.l.b16 %v856
    %v929 = vunpack.c.h.b16 %v856
    %v930 = vunpack.c.l.b16 %v857
    %v931 = vunpack.c.h.b16 %v857
    %v932 = vunpack.c.l.b16 %v858
    %v933 = vunpack.c.h.b16 %v858
    %v934 = vunpack.c.l.b16 %v859
    %v935 = vunpack.c.h.b16 %v859
    %v936 = vunpack.c.l.b16 %v860
    %v937 = vunpack.c.h.b16 %v860
    %v938 = vunpack.c.l.b16 %v861
    %v939 = vunpack.c.h.b16 %v861
    %v940 = vunpack.c.l.b16 %v862
    %v941 = vunpack.c.h.b16 %v862
    %v942 = vunpack.c.l.b16 %v863
    %v943 = vunpack.c.h.b16 %v863
    %v944 = vunpack.c.l.b16 %v864
    %v945 = vunpack.c.h.b16 %v864
    %v946 = vunpack.c.l.b16 %v865
    %v947 = vunpack.c.h.b16 %v865
    %v948 = vunpack.c.l.b16 %v866
    %v949 = vunpack.c.h.b16 %v866
    %v950 = vunpack.c.l.b16 %v867
    %v951 = vunpack.c.h.b16 %v867
    %v952 = vunpack.c.l.b16 %v868
    %v953 = vunpack.c.h.b16 %v868
    %v954 = vunpack.c.l.b16 %v869
    %v955 = vunpack.c.h.b16 %v869
    %v956 = vunpack.c.l.b16 %v870
    %v957 = vunpack.c.h.b16 %v870
    %v958 = vunpack.c.l.b16 %v871
    %v959 = vunpack.c.h.b16 %v871
    %v960 = vunpack.c.l.b16 %v872
    %v961 = vunpack.c.h.b16 %v872
    %v962 = vunpack.c.l.b16 %v873
    %v963 = vunpack.c.h.b16 %v873
    %v964 = vunpack.c.l.b16 %v874
    %v965 = vunpack.c.h.b16 %v874
    %v966 = vunpack.c.l.b16 %v875
    %v967 = vunpack.c.h.b16 %v875
    %v968 = vunpack.c.l.b16 %v876
    %v969 = vunpack.c.h.b16 %v876
    %v970 = vunpack.c.l.b16 %v877
    %v971 = vunpack.c.h.b16 %v877
    %v972 = vunpack.c.l.b16 %v878
    %v973 = vunpack.c.h.b16 %v878
    %v974 = vunpack.c.l.b16 %v879
    %v975 = vunpack.c.h.b16 %v879
    %v976 = vpack.c.b16 %v914, %v912
    %v977 = vpack.c.b16 %v915, %v913
    %v978 = vpack.c.b16 %v918, %v916
    %v979 = vpack.c.b16 %v919, %v917
    %v980 = vpack.c.b16 %v922, %v920
    %v981 = vpack.c.b16 %v923, %v921
    %v982 = vpack.c.b16 %v926, %v924
    %v983 = vpack.c.b16 %v927, %v925
    %v984 = vpack.c.b16 %v930, %v928
    %v985 = vpack.c.b16 %v931, %v929
    %v986 = vpack.c.b16 %v934, %v932
    %v987 = vpack.c.b16 %v935, %v933
    %v988 = vpack.c.b16 %v938, %v936
    %v989 = vpack.c.b16 %v939, %v937
    %v990 = vpack.c.b16 %v942, %v940
    %v991 = vpack.c.b16 %v943, %v941
    %v992 = vpack.c.b16 %v946, %v944
    %v993 = vpack.c.b16 %v947, %v945
    %v994 = vpack.c.b16 %v950, %v948
    %v995 = vpack.c.b16 %v951, %v949
    %v996 = vpack.c.b16 %v954, %v952
    %v997 = vpack.c.b16 %v955, %v953
    %v998 = vpack.c.b16 %v958, %v956
    %v999 = vpack.c.b16 %v959, %v957
    %v1000 = vpack.c.b16 %v962, %v960
    %v1001 = vpack.c.b16 %v963, %v961
    %v1002 = vpack.c.b16 %v966, %v964
    %v1003 = vpack.c.b16 %v967, %v965
    %v1004 = vpack.c.b16 %v970, %v968
    %v1005 = vpack.c.b16 %v971, %v969
    %v1006 = vpack.c.b16 %v974, %v972
    %v1007 = vpack.c.b16 %v975, %v973
    %1040 = vmatprep.subr.bf16.mxu0 %v977
    %1041 = vmatpush1.bf16.msra.mxu0 %v976
    %1042 = vmatprep.subr.bf16.mxu0 %v979
    %1043 = vmatpush1.bf16.msra.mxu0 %v978
    %1044 = vmatprep.subr.bf16.mxu0 %v981
    %1045 = vmatpush1.bf16.msra.mxu0 %v980
    %1046 = vmatprep.subr.bf16.mxu0 %v983
    %1047 = vmatpush1.bf16.msra.mxu0 %v982
    %1048 = vmatprep.subr.bf16.mxu0 %v985
    %1049 = vmatpush1.bf16.msra.mxu0 %v984
    %1050 = vmatprep.subr.bf16.mxu0 %v987
    %1051 = vmatpush1.bf16.msra.mxu0 %v986
    %1052 = vmatprep.subr.bf16.mxu0 %v989
    %1053 = vmatpush1.bf16.msra.mxu0 %v988
    %1054 = vmatprep.subr.bf16.mxu0 %v991
    %1055 = vmatpush1.bf16.msra.mxu0 %v990
    %1056 = vmatprep.subr.bf16.mxu0 %v993
    %1057 = vmatpush1.bf16.msra.mxu0 %v992
    %1058 = vmatprep.subr.bf16.mxu0 %v995
    %1059 = vmatpush1.bf16.msra.mxu0 %v994
    %1060 = vmatprep.subr.bf16.mxu0 %v997
    %1061 = vmatpush1.bf16.msra.mxu0 %v996
    %1062 = vmatprep.subr.bf16.mxu0 %v999
    %1063 = vmatpush1.bf16.msra.mxu0 %v998
    %1064 = vmatprep.subr.bf16.mxu0 %v1001
    %1065 = vmatpush1.bf16.msra.mxu0 %v1000
    %1066 = vmatprep.subr.bf16.mxu0 %v1003
    %1067 = vmatpush1.bf16.msra.mxu0 %v1002
    %1068 = vmatprep.subr.bf16.mxu0 %v1005
    %1069 = vmatpush1.bf16.msra.mxu0 %v1004
    %1070 = vmatprep.subr.bf16.mxu0 %v1007
    %1071 = vmatpush1.bf16.msra.mxu0 %v1006
    %1072 = vmatprep.mubr.bf16.mxu0 %v700
    %1073 = vmatmul.mubr.bf16.gmra.mrb[0].mxu0 %v699
    %v1074 = vpop.f32.mrb[0].mxu0
    %v1075 = vadd.f32 %v840, %v1074
    %v1076 = vpop.f32.mrb[0].mxu0
    %v1077 = vadd.f32 %v842, %v1076
    %v1078 = vpop.f32.mrb[0].mxu0
    %v1079 = vadd.f32 %v844, %v1078
    %v1080 = vpop.f32.mrb[0].mxu0
    %v1081 = vadd.f32 %v846, %v1080
    %1082 = vdwg.mxu0
    %s1083 = scalar_lea.vmem %s4, 2
    %v1084 = vld [vmem:[%s1083] ss:$8 sm:$0x3]
    %v1086 = vlaneseq
    %v1087 = vshrl.u32 %v1086, 7
    %v1088 = vsub.s32 0, %v1087
    %v1089 = vrot.slane %v1084, %v1088
    %v1090 = vlaneseq
    %v1091 = vshrl.u32 %v1090, 7
    %v1092 = vsub.s32 1, %v1091
    %v1093 = vrot.slane %v1084, %v1092
    %v1096 = vadd.f32 %v1075, %v1089
    %v1097 = vadd.f32 %v1077, %v1093
    %v1098 = vadd.f32 %v1079, %v1089
    %v1099 = vadd.f32 %v1081, %v1093
    %v1100 = vmax.f32 %v1096, 0.0
    %v1101 = vmax.f32 %v1097, 0.0
    %v1102 = vmax.f32 %v1098, 0.0
    %v1103 = vmax.f32 %v1099, 0.0
    %v1104 = vpack.c.bf16 %v1102, %v1100
    %v1105 = vpack.c.bf16 %v1103, %v1101
    %v1106 = vld [vmem:[#allocation2 + $0x400] sm:$0xff]
    %v1107 = vld [vmem:[#allocation2 + $0x408] sm:$0xff]
    %v1108 = vld [vmem:[#allocation2 + $0x410] sm:$0xff]
    %v1109 = vld [vmem:[#allocation2 + $0x418] sm:$0xff]
    %v1110 = vld [vmem:[#allocation2 + $0x420] sm:$0xff]
    %v1111 = vld [vmem:[#allocation2 + $0x428] sm:$0xff]
    %v1112 = vld [vmem:[#allocation2 + $0x430] sm:$0xff]
    %v1113 = vld [vmem:[#allocation2 + $0x438] sm:$0xff]
    %v1114 = vld [vmem:[#allocation2 + $0x440] sm:$0xff]
    %v1115 = vld [vmem:[#allocation2 + $0x448] sm:$0xff]
    %v1116 = vld [vmem:[#allocation2 + $0x450] sm:$0xff]
    %v1117 = vld [vmem:[#allocation2 + $0x458] sm:$0xff]
    %v1118 = vld [vmem:[#allocation2 + $0x460] sm:$0xff]
    %v1119 = vld [vmem:[#allocation2 + $0x468] sm:$0xff]
    %v1120 = vld [vmem:[#allocation2 + $0x470] sm:$0xff]
    %v1121 = vld [vmem:[#allocation2 + $0x478] sm:$0xff]
    %v1122 = vld [vmem:[#allocation2 + $0x480] sm:$0xff]
    %v1123 = vld [vmem:[#allocation2 + $0x488] sm:$0xff]
    %v1124 = vld [vmem:[#allocation2 + $0x490] sm:$0xff]
    %v1125 = vld [vmem:[#allocation2 + $0x498] sm:$0xff]
    %v1126 = vld [vmem:[#allocation2 + $0x4a0] sm:$0xff]
    %v1127 = vld [vmem:[#allocation2 + $0x4a8] sm:$0xff]
    %v1128 = vld [vmem:[#allocation2 + $0x4b0] sm:$0xff]
    %v1129 = vld [vmem:[#allocation2 + $0x4b8] sm:$0xff]
    %v1130 = vld [vmem:[#allocation2 + $0x4c0] sm:$0xff]
    %v1131 = vld [vmem:[#allocation2 + $0x4c8] sm:$0xff]
    %v1132 = vld [vmem:[#allocation2 + $0x4d0] sm:$0xff]
    %v1133 = vld [vmem:[#allocation2 + $0x4d8] sm:$0xff]
    %v1134 = vld [vmem:[#allocation2 + $0x4e0] sm:$0xff]
    %v1135 = vld [vmem:[#allocation2 + $0x4e8] sm:$0xff]
    %v1136 = vld [vmem:[#allocation2 + $0x4f0] sm:$0xff]
    %v1137 = vld [vmem:[#allocation2 + $0x4f8] sm:$0xff]
    %s1138 = scalar_lea.vmem %s4, 3
    %v1139 = vld [vmem:[%s1138] ss:$8 sm:$0x3]
    %v1141 = vlaneseq
    %v1142 = vshrl.u32 %v1141, 7
    %v1143 = vsub.s32 0, %v1142
    %v1144 = vrot.slane %v1139, %v1143
    %v1145 = vlaneseq
    %v1146 = vshrl.u32 %v1145, 7
    %v1147 = vsub.s32 1, %v1146
    %v1148 = vrot.slane %v1139, %v1147
    %v1183 = vunpack.c.l.b16 %v1106
    %v1184 = vunpack.c.h.b16 %v1106
    %v1185 = vunpack.c.l.b16 %v1107
    %v1186 = vunpack.c.h.b16 %v1107
    %v1187 = vunpack.c.l.b16 %v1108
    %v1188 = vunpack.c.h.b16 %v1108
    %v1189 = vunpack.c.l.b16 %v1109
    %v1190 = vunpack.c.h.b16 %v1109
    %v1191 = vunpack.c.l.b16 %v1110
    %v1192 = vunpack.c.h.b16 %v1110
    %v1193 = vunpack.c.l.b16 %v1111
    %v1194 = vunpack.c.h.b16 %v1111
    %v1195 = vunpack.c.l.b16 %v1112
    %v1196 = vunpack.c.h.b16 %v1112
    %v1197 = vunpack.c.l.b16 %v1113
    %v1198 = vunpack.c.h.b16 %v1113
    %v1199 = vunpack.c.l.b16 %v1114
    %v1200 = vunpack.c.h.b16 %v1114
    %v1201 = vunpack.c.l.b16 %v1115
    %v1202 = vunpack.c.h.b16 %v1115
    %v1203 = vunpack.c.l.b16 %v1116
    %v1204 = vunpack.c.h.b16 %v1116
    %v1205 = vunpack.c.l.b16 %v1117
    %v1206 = vunpack.c.h.b16 %v1117
    %v1207 = vunpack.c.l.b16 %v1118
    %v1208 = vunpack.c.h.b16 %v1118
    %v1209 = vunpack.c.l.b16 %v1119
    %v1210 = vunpack.c.h.b16 %v1119
    %v1211 = vunpack.c.l.b16 %v1120
    %v1212 = vunpack.c.h.b16 %v1120
    %v1213 = vunpack.c.l.b16 %v1121
    %v1214 = vunpack.c.h.b16 %v1121
    %v1215 = vunpack.c.l.b16 %v1122
    %v1216 = vunpack.c.h.b16 %v1122
    %v1217 = vunpack.c.l.b16 %v1123
    %v1218 = vunpack.c.h.b16 %v1123
    %v1219 = vunpack.c.l.b16 %v1124
    %v1220 = vunpack.c.h.b16 %v1124
    %v1221 = vunpack.c.l.b16 %v1125
    %v1222 = vunpack.c.h.b16 %v1125
    %v1223 = vunpack.c.l.b16 %v1126
    %v1224 = vunpack.c.h.b16 %v1126
    %v1225 = vunpack.c.l.b16 %v1127
    %v1226 = vunpack.c.h.b16 %v1127
    %v1227 = vunpack.c.l.b16 %v1128
    %v1228 = vunpack.c.h.b16 %v1128
    %v1229 = vunpack.c.l.b16 %v1129
    %v1230 = vunpack.c.h.b16 %v1129
    %v1231 = vunpack.c.l.b16 %v1130
    %v1232 = vunpack.c.h.b16 %v1130
    %v1233 = vunpack.c.l.b16 %v1131
    %v1234 = vunpack.c.h.b16 %v1131
    %v1235 = vunpack.c.l.b16 %v1132
    %v1236 = vunpack.c.h.b16 %v1132
    %v1237 = vunpack.c.l.b16 %v1133
    %v1238 = vunpack.c.h.b16 %v1133
    %v1239 = vunpack.c.l.b16 %v1134
    %v1240 = vunpack.c.h.b16 %v1134
    %v1241 = vunpack.c.l.b16 %v1135
    %v1242 = vunpack.c.h.b16 %v1135
    %v1243 = vunpack.c.l.b16 %v1136
    %v1244 = vunpack.c.h.b16 %v1136
    %v1245 = vunpack.c.l.b16 %v1137
    %v1246 = vunpack.c.h.b16 %v1137
    %v1247 = vpack.c.b16 %v1185, %v1183
    %v1248 = vpack.c.b16 %v1186, %v1184
    %v1249 = vpack.c.b16 %v1189, %v1187
    %v1250 = vpack.c.b16 %v1190, %v1188
    %v1251 = vpack.c.b16 %v1193, %v1191
    %v1252 = vpack.c.b16 %v1194, %v1192
    %v1253 = vpack.c.b16 %v1197, %v1195
    %v1254 = vpack.c.b16 %v1198, %v1196
    %v1255 = vpack.c.b16 %v1201, %v1199
    %v1256 = vpack.c.b16 %v1202, %v1200
    %v1257 = vpack.c.b16 %v1205, %v1203
    %v1258 = vpack.c.b16 %v1206, %v1204
    %v1259 = vpack.c.b16 %v1209, %v1207
    %v1260 = vpack.c.b16 %v1210, %v1208
    %v1261 = vpack.c.b16 %v1213, %v1211
    %v1262 = vpack.c.b16 %v1214, %v1212
    %v1263 = vpack.c.b16 %v1217, %v1215
    %v1264 = vpack.c.b16 %v1218, %v1216
    %v1265 = vpack.c.b16 %v1221, %v1219
    %v1266 = vpack.c.b16 %v1222, %v1220
    %v1267 = vpack.c.b16 %v1225, %v1223
    %v1268 = vpack.c.b16 %v1226, %v1224
    %v1269 = vpack.c.b16 %v1229, %v1227
    %v1270 = vpack.c.b16 %v1230, %v1228
    %v1271 = vpack.c.b16 %v1233, %v1231
    %v1272 = vpack.c.b16 %v1234, %v1232
    %v1273 = vpack.c.b16 %v1237, %v1235
    %v1274 = vpack.c.b16 %v1238, %v1236
    %v1275 = vpack.c.b16 %v1241, %v1239
    %v1276 = vpack.c.b16 %v1242, %v1240
    %v1277 = vpack.c.b16 %v1245, %v1243
    %v1278 = vpack.c.b16 %v1246, %v1244
    %1311 = vmatprep.subr.bf16.mxu0 %v1248
    %1312 = vmatpush1.bf16.msra.mxu0 %v1247
    %1313 = vmatprep.subr.bf16.mxu0 %v1250
    %1314 = vmatpush1.bf16.msra.mxu0 %v1249
    %1315 = vmatprep.subr.bf16.mxu0 %v1252
    %1316 = vmatpush1.bf16.msra.mxu0 %v1251
    %1317 = vmatprep.subr.bf16.mxu0 %v1254
    %1318 = vmatpush1.bf16.msra.mxu0 %v1253
    %1319 = vmatprep.subr.bf16.mxu0 %v1256
    %1320 = vmatpush1.bf16.msra.mxu0 %v1255
    %1321 = vmatprep.subr.bf16.mxu0 %v1258
    %1322 = vmatpush1.bf16.msra.mxu0 %v1257
    %1323 = vmatprep.subr.bf16.mxu0 %v1260
    %1324 = vmatpush1.bf16.msra.mxu0 %v1259
    %1325 = vmatprep.subr.bf16.mxu0 %v1262
    %1326 = vmatpush1.bf16.msra.mxu0 %v1261
    %1327 = vmatprep.subr.bf16.mxu0 %v1264
    %1328 = vmatpush1.bf16.msra.mxu0 %v1263
    %1329 = vmatprep.subr.bf16.mxu0 %v1266
    %1330 = vmatpush1.bf16.msra.mxu0 %v1265
    %1331 = vmatprep.subr.bf16.mxu0 %v1268
    %1332 = vmatpush1.bf16.msra.mxu0 %v1267
    %1333 = vmatprep.subr.bf16.mxu0 %v1270
    %1334 = vmatpush1.bf16.msra.mxu0 %v1269
    %1335 = vmatprep.subr.bf16.mxu0 %v1272
    %1336 = vmatpush1.bf16.msra.mxu0 %v1271
    %1337 = vmatprep.subr.bf16.mxu0 %v1274
    %1338 = vmatpush1.bf16.msra.mxu0 %v1273
    %1339 = vmatprep.subr.bf16.mxu0 %v1276
    %1340 = vmatpush1.bf16.msra.mxu0 %v1275
    %1341 = vmatprep.subr.bf16.mxu0 %v1278
    %1342 = vmatpush1.bf16.msra.mxu0 %v1277
    %1343 = vmatprep.mubr.bf16.mxu0 %v1105
    %1344 = vmatmul.mubr.bf16.gmra.mrb[0].mxu0 %v1104
    %v1345 = vpop.f32.mrb[0].mxu0
    %v1346 = vadd.f32 %v1144, %v1345
    %v1347 = vpop.f32.mrb[0].mxu0
    %v1348 = vadd.f32 %v1148, %v1347
    %v1349 = vpop.f32.mrb[0].mxu0
    %v1350 = vadd.f32 %v1144, %v1349
    %v1351 = vpop.f32.mrb[0].mxu0
    %v1352 = vadd.f32 %v1148, %v1351
    %1353 = vdwg.mxu0
    %v1354 = vmax.f32 %v1346, 0.0
    %v1355 = vmax.f32 %v1348, 0.0
    %v1356 = vmax.f32 %v1350, 0.0
    %v1357 = vmax.f32 %v1352, 0.0
    %v1358 = vpack.c.bf16 %v1356, %v1354
    %v1359 = vpack.c.bf16 %v1357, %v1355
    %v1360 = vld [vmem:[%s3] sm:$0xf]
    %v1361 = vld [vmem:[%s3 + $0x4] sm:$0xf]
    %v1362 = vld [vmem:[%s3 + $0x8] sm:$0xf]
    %v1363 = vld [vmem:[%s3 + $0xc] sm:$0xf]
    %v1364 = vld [vmem:[%s3 + $0x10] sm:$0xf]
    %v1365 = vld [vmem:[%s3 + $0x14] sm:$0xf]
    %v1366 = vld [vmem:[%s3 + $0x18] sm:$0xf]
    %v1367 = vld [vmem:[%s3 + $0x1c] sm:$0xf]
    %v1368 = vld [vmem:[%s3 + $0x20] sm:$0xf]
    %v1369 = vld [vmem:[%s3 + $0x24] sm:$0xf]
    %v1370 = vld [vmem:[%s3 + $0x28] sm:$0xf]
    %v1371 = vld [vmem:[%s3 + $0x2c] sm:$0xf]
    %v1372 = vld [vmem:[%s3 + $0x30] sm:$0xf]
    %v1373 = vld [vmem:[%s3 + $0x34] sm:$0xf]
    %v1374 = vld [vmem:[%s3 + $0x38] sm:$0xf]
    %v1375 = vld [vmem:[%s3 + $0x3c] sm:$0xf]
    %v1376 = vld [vmem:[%s3 + $0x40] sm:$0xf]
    %v1377 = vld [vmem:[%s3 + $0x44] sm:$0xf]
    %v1378 = vld [vmem:[%s3 + $0x48] sm:$0xf]
    %v1379 = vld [vmem:[%s3 + $0x4c] sm:$0xf]
    %v1380 = vld [vmem:[%s3 + $0x50] sm:$0xf]
    %v1381 = vld [vmem:[%s3 + $0x54] sm:$0xf]
    %v1382 = vld [vmem:[%s3 + $0x58] sm:$0xf]
    %v1383 = vld [vmem:[%s3 + $0x5c] sm:$0xf]
    %v1384 = vld [vmem:[%s3 + $0x60] sm:$0xf]
    %v1385 = vld [vmem:[%s3 + $0x64] sm:$0xf]
    %v1386 = vld [vmem:[%s3 + $0x68] sm:$0xf]
    %v1387 = vld [vmem:[%s3 + $0x6c] sm:$0xf]
    %v1388 = vld [vmem:[%s3 + $0x70] sm:$0xf]
    %v1389 = vld [vmem:[%s3 + $0x74] sm:$0xf]
    %v1390 = vld [vmem:[%s3 + $0x78] sm:$0xf]
    %v1391 = vld [vmem:[%s3 + $0x7c] sm:$0xf]
    %v1392 = vld [vmem:[%s4 + $0x4] ss:$0 sm:$0xff]
    %v1425 = vunpack.c.l.b16 %v1360
    %v1426 = vunpack.c.l.b16 %v1361
    %v1427 = vunpack.c.l.b16 %v1362
    %v1428 = vunpack.c.l.b16 %v1363
    %v1429 = vunpack.c.l.b16 %v1364
    %v1430 = vunpack.c.l.b16 %v1365
    %v1431 = vunpack.c.l.b16 %v1366
    %v1432 = vunpack.c.l.b16 %v1367
    %v1433 = vunpack.c.l.b16 %v1368
    %v1434 = vunpack.c.l.b16 %v1369
    %v1435 = vunpack.c.l.b16 %v1370
    %v1436 = vunpack.c.l.b16 %v1371
    %v1437 = vunpack.c.l.b16 %v1372
    %v1438 = vunpack.c.l.b16 %v1373
    %v1439 = vunpack.c.l.b16 %v1374
    %v1440 = vunpack.c.l.b16 %v1375
    %v1441 = vunpack.c.l.b16 %v1376
    %v1442 = vunpack.c.l.b16 %v1377
    %v1443 = vunpack.c.l.b16 %v1378
    %v1444 = vunpack.c.l.b16 %v1379
    %v1445 = vunpack.c.l.b16 %v1380
    %v1446 = vunpack.c.l.b16 %v1381
    %v1447 = vunpack.c.l.b16 %v1382
    %v1448 = vunpack.c.l.b16 %v1383
    %v1449 = vunpack.c.l.b16 %v1384
    %v1450 = vunpack.c.l.b16 %v1385
    %v1451 = vunpack.c.l.b16 %v1386
    %v1452 = vunpack.c.l.b16 %v1387
    %v1453 = vunpack.c.l.b16 %v1388
    %v1454 = vunpack.c.l.b16 %v1389
    %v1455 = vunpack.c.l.b16 %v1390
    %v1456 = vunpack.c.l.b16 %v1391
    %v1457 = vpack.c.b16 %v1426, %v1425
    %v1458 = vpack.c.b16 %v1428, %v1427
    %v1459 = vpack.c.b16 %v1430, %v1429
    %v1460 = vpack.c.b16 %v1432, %v1431
    %v1461 = vpack.c.b16 %v1434, %v1433
    %v1462 = vpack.c.b16 %v1436, %v1435
    %v1463 = vpack.c.b16 %v1438, %v1437
    %v1464 = vpack.c.b16 %v1440, %v1439
    %v1465 = vpack.c.b16 %v1442, %v1441
    %v1466 = vpack.c.b16 %v1444, %v1443
    %v1467 = vpack.c.b16 %v1446, %v1445
    %v1468 = vpack.c.b16 %v1448, %v1447
    %v1469 = vpack.c.b16 %v1450, %v1449
    %v1470 = vpack.c.b16 %v1452, %v1451
    %v1471 = vpack.c.b16 %v1454, %v1453
    %v1472 = vpack.c.b16 %v1456, %v1455
    %1489 = vmatprep.subr.bf16.mxu0 0
    %1490 = vmatpush1.bf16.msra.mxu0 %v1457
    %1491 = vmatprep.subr.bf16.mxu0 0
    %1492 = vmatpush1.bf16.msra.mxu0 %v1458
    %1493 = vmatprep.subr.bf16.mxu0 0
    %1494 = vmatpush1.bf16.msra.mxu0 %v1459
    %1495 = vmatprep.subr.bf16.mxu0 0
    %1496 = vmatpush1.bf16.msra.mxu0 %v1460
    %1497 = vmatprep.subr.bf16.mxu0 0
    %1498 = vmatpush1.bf16.msra.mxu0 %v1461
    %1499 = vmatprep.subr.bf16.mxu0 0
    %1500 = vmatpush1.bf16.msra.mxu0 %v1462
    %1501 = vmatprep.subr.bf16.mxu0 0
    %1502 = vmatpush1.bf16.msra.mxu0 %v1463
    %1503 = vmatprep.subr.bf16.mxu0 0
    %1504 = vmatpush1.bf16.msra.mxu0 %v1464
    %1505 = vmatprep.subr.bf16.mxu0 0
    %1506 = vmatpush1.bf16.msra.mxu0 %v1465
    %1507 = vmatprep.subr.bf16.mxu0 0
    %1508 = vmatpush1.bf16.msra.mxu0 %v1466
    %1509 = vmatprep.subr.bf16.mxu0 0
    %1510 = vmatpush1.bf16.msra.mxu0 %v1467
    %1511 = vmatprep.subr.bf16.mxu0 0
    %1512 = vmatpush1.bf16.msra.mxu0 %v1468
    %1513 = vmatprep.subr.bf16.mxu0 0
    %1514 = vmatpush1.bf16.msra.mxu0 %v1469
    %1515 = vmatprep.subr.bf16.mxu0 0
    %1516 = vmatpush1.bf16.msra.mxu0 %v1470
    %1517 = vmatprep.subr.bf16.mxu0 0
    %1518 = vmatpush1.bf16.msra.mxu0 %v1471
    %1519 = vmatprep.subr.bf16.mxu0 0
    %1520 = vmatpush1.bf16.msra.mxu0 %v1472
    %1521 = vmatprep.mubr.bf16.mxu0 %v1359
    %1522 = vmatmul.mubr.bf16.gmra.mrb[0].mxu0 %v1358
    %v1523 = vpop.f32.mrb[0].mxu0
    %v1524 = vadd.f32 %v1392, %v1523
    %v1525 = vpop.f32.mrb[0].mxu0
    %v1526 = vpop.f32.mrb[0].mxu0
    %v1527 = vadd.f32 %v1392, %v1526
    %v1528 = vpop.f32.mrb[0].mxu0
    %1529 = vdwg.mxu0
    %vm1530 = vcmask 261120
    %1531 = vst.msk [vmem:[%s5] sm:$0xff] %vm1530, %v1524
    %1532 = vst.msk [vmem:[%s5 + $0x8] sm:$0xff] %vm1530, %v1527
    // Predicated region
    $region26: #{hpnet_forward.1} parent=1 // pred_check
      _
    $region27: #{hpnet_forward.1} parent=1 // pred_check_branch
      %1534 = sbr.rel (0) target = $region29
    $region28: #{hpnet_forward.1} parent=1 // pred_region
      _
    $region29: #{hpnet_forward.1} parent=1 // pred_fallthru
      _
    // Predicated region
    $region30: #{hpnet_forward.1} parent=1 // pred_check
      _
    $region31: #{hpnet_forward.1} parent=1 // pred_check_branch
      %1536 = sbr.rel (0) target = $region33
    $region32: #{hpnet_forward.1} parent=1 // pred_region
      _
    $region33: #{hpnet_forward.1} parent=1 // pred_fallthru
      _
    %1537 = vsyncpa [#allocation3], 1

</llo_original>
